<compile_context>
chip_gen: v5e
topology: v5e:2x2
jax: 0.10.0
libtpu: 0.0.40
codegen_flags: <defaults>
</compile_context>

<pallas_src>
import numpy as np
import jax
import jax.numpy as jnp
from jax.experimental import pallas as pl
from jax.experimental.pallas import tpu as pltpu

LEAKY_SLOPE = 0.1


# ----------------------------- host-side helpers ---------------------------- #
def _make_tap_masks(H, W):
    """(9, H*W) f32 masks zeroing out-of-image taps of a 3x3 'same' conv.

    Tap order: dy in (-1,0,1) outer, dx in (-1,0,1) inner.  Tap t reads input
    pixel (y+dy, x+dx) for output pixel (y, x); the mask zeroes output positions
    whose read falls outside the image (emulates zero padding, and also makes
    cross-image reads harmless when several images are lane-packed)."""
    m = np.ones((9, H, W), np.float32)
    t = 0
    for dy in (-1, 0, 1):
        for dx in (-1, 0, 1):
            if dy == -1:
                m[t, 0, :] = 0.0
            if dy == 1:
                m[t, H - 1, :] = 0.0
            if dx == -1:
                m[t, :, 0] = 0.0
            if dx == 1:
                m[t, :, W - 1] = 0.0
            t += 1
    return jnp.asarray(m.reshape(9, H * W))


def _prep_weight_slab(params_F, params_G, c1, c2, dtype):
    """Pack the 6 conv layers' HWIO (3,3,Cin,Cout) weights as (Cout, 9*Cin)
    matmul weights with the bias folded in as one extra trailing column
    (matched by a ones row in the in-kernel im2col stack) into ONE zero-padded
    (6, cmax, 9*cmax+1) slab -> a single weight DMA instead of ~12 tiny ones.
    Row order of the 9*Cin axis is tap-major, channel-minor, matching the
    im2col stack built in the kernel."""
    cmax = max(c1, c2)
    kmax = 9 * cmax + 1
    layers = []
    for (w1, b1, w2, b2, w3, b3) in (params_F, params_G):
        layers += [(w1, b1), (w2, b2), (w3, b3)]
    slab = jnp.zeros((6, cmax, kmax), jnp.float32)
    for i, (w, b) in enumerate(layers):
        kh, kw, cin, cout = w.shape
        wmat = jnp.transpose(w.astype(jnp.float32).reshape(kh * kw * cin, cout))
        slab = slab.at[i, :cout, :9 * cin].set(wmat)
        slab = slab.at[i, :cout, 9 * cin].set(
            jnp.reshape(b.astype(jnp.float32), (-1,)))
    return slab.astype(dtype)


def _pick_images_per_step(N, C, HW, c1, c2):
    """Pack as many images per grid step as fit a conservative VMEM budget
    (widens the MXU lane dim, amortizes per-step pipeline overhead), but keep
    >= 2 grid steps when the batch allows it and lanes are already wide enough
    (v7x has 2 TensorCores sharing 'parallel' grid axes)."""
    budget = 6 * 1024 * 1024                     # well under v5e's 16 MiB scoped default
    kmax = 9 * max(c1, c2) + 1

    def vmem_est(d):
        lanes = d * HW
        io = 2 * 2 * C * lanes * 4               # double-buffered input + output
        live = (kmax + 4 * max(c1, c2) + C) * lanes * 4   # stack + activations
        return io + live

    fits = [d for d in range(1, N + 1) if N % d == 0 and vmem_est(d) <= budget]
    if not fits:
        return 1
    best = max(fits)
    multi = [d for d in fits if (N // d) >= 2 and d * HW >= 512]
    if multi:
        best = max(multi)
    return best


# ------------------------------ Pallas kernel ------------------------------- #
def _make_rev_coupling_kernel(c1, c2, H, W, lanes, rev, matmul_dtype):
    """Fused reversible-coupling kernel; one (C, lanes) lane-packed slab/step."""
    f32 = jnp.float32

    # Tap lane-shifts: rolled[p] = x[p + dy*W + dx]  (jnp.roll semantics),
    # modulo the FULL packed lane width (wraps are masked out).
    tap_shifts = []
    for dy in (-1, 0, 1):
        for dx in (-1, 0, 1):
            tap_shifts.append((-(dy * W + dx)) % lanes)
    center_tap = 4  # dy == dx == 0

    def kernel(x_ref, mask_ref, w_ref, o_ref):
        x = x_ref[...].astype(f32)                        # (C, lanes)
        x1 = x[:c1, :]
        x2 = x[c1:, :]

        # Hoisted: 9 pre-split (1, lanes) boundary masks + the bias ones-row.
        mask_rows = [mask_ref[t] for t in range(9)]       # each (1, lanes)
        ones_row = jnp.ones((1, lanes), f32)

        def conv3x3(h, layer, cin, cout):
            # 3x3 'same' conv: 9 rolled/masked taps stacked in registers,
            # bias folded via the ones row, one MXU contraction (bf16 in,
            # f32 accumulate).
            taps = []
            for t, shift in enumerate(tap_shifts):
                tap = h if shift == 0 else pltpu.roll(h, shift, axis=1)
                if t != center_tap:
                    tap = tap * mask_rows[t]
                taps.append(tap)
            stack = jnp.concatenate(taps + [ones_row], axis=0)   # (9*cin+1, L)
            w = w_ref[layer][:cout, :9 * cin + 1]                # (cout, 9*cin+1)
            return jnp.dot(w, stack.astype(matmul_dtype),
                           preferred_element_type=f32)

        def lrelu(v):
            return jnp.maximum(v, LEAKY_SLOPE * v)

        def f_conv(h, base, cin, cout):
            h = lrelu(conv3x3(h, base + 0, cin, cout))
            h = lrelu(conv3x3(h, base + 1, cout, cout))
            return conv3x3(h, base + 2, cout, cout)

        if not rev:
            y1 = x1 + f_conv(x2, 0, c2, c1)   # F: c2 -> c1 (layers 0..2)
            y2 = x2 + f_conv(y1, 3, c1, c2)   # G: c1 -> c2 (layers 3..5)
        else:
            y2 = x2 - f_conv(x1, 3, c1, c2)
            y1 = x1 - f_conv(y2, 0, c2, c1)

        # Single lane-dense full-slab store.
        o_ref[...] = jnp.concatenate([y1, y2], axis=0).astype(o_ref.dtype)

    return kernel


# ----------------------------- rev_layer forward ---------------------------- #
def rev_layer_forward(x_nchw, params_F, params_G, split_len1, rev=False,
                      matmul_dtype=jnp.bfloat16, images_per_step=None):
    """Reversible coupling layer.  Input/output in NCHW (PyTorch convention)."""
    N, C, H, W = x_nchw.shape
    c1 = int(split_len1)
    c2 = C - c1
    HW = H * W

    if images_per_step is None:
        images_per_step = _pick_images_per_step(N, C, HW, c1, c2)
    assert N % images_per_step == 0
    steps = N // images_per_step
    lanes = images_per_step * HW

    w_slab = _prep_weight_slab(params_F, params_G, c1, c2, matmul_dtype)
    masks = _make_tap_masks(H, W)                                    # (9, HW)
    masks = jnp.tile(masks, (1, images_per_step)).reshape(9, 1, lanes)

    # Lane-pack the batch: NCHW -> (C, N*H*W); channels on sublanes, batch and
    # spatial on the lane axis (this transpose is negligible vs conv FLOPs).
    x = jnp.transpose(x_nchw, (1, 0, 2, 3)).reshape(C, N * HW)

    kernel = _make_rev_coupling_kernel(c1, c2, H, W, lanes, bool(rev),
                                       matmul_dtype)

    y = pl.pallas_call(
        kernel,
        out_shape=jax.ShapeDtypeStruct((C, N * HW), x_nchw.dtype),
        grid_spec=pltpu.PrefetchScalarGridSpec(
            num_scalar_prefetch=0,
            grid=(steps,),
            in_specs=[pl.BlockSpec((C, lanes), lambda g: (0, g)),
                      pl.BlockSpec(masks.shape, lambda g: (0, 0, 0)),
                      pl.BlockSpec(w_slab.shape, lambda g: (0, 0, 0))],
            out_specs=pl.BlockSpec((C, lanes), lambda g: (0, g)),
        ),
        compiler_params=pltpu.CompilerParams(
            dimension_semantics=("parallel",),
            vmem_limit_bytes=32 * 1024 * 1024),
    )(x, masks, w_slab)

    return jnp.transpose(y.reshape(C, N, H, W), (1, 0, 2, 3))


def rev_layer_jacobian(x_nchw, rev=False):
    return jnp.zeros((x_nchw.shape[0],), jnp.float32)


# ------------------------ pure-JAX reference (checking) --------------------- #
def _f_conv_ref(x_nhwc, params):
    w1, b1, w2, b2, w3, b3 = params

    def conv(x, w, b):
        y = jax.lax.conv_general_dilated(
            x, w, window_strides=(1, 1), padding="SAME",
            dimension_numbers=("NHWC", "HWIO", "NHWC"))
        return y + b.reshape(1, 1, 1, -1)

    h = conv(x_nhwc, w1, b1)
    h = jnp.where(h > 0, h, LEAKY_SLOPE * h)
    h = conv(h, w2, b2)
    h = jnp.where(h > 0, h, LEAKY_SLOPE * h)
    return conv(h, w3, b3)


def rev_layer_ref(x_nchw, params_F, params_G, split_len1, rev=False):
    x = jnp.transpose(x_nchw, (0, 2, 3, 1))
    x1, x2 = x[..., :split_len1], x[..., split_len1:]
    if not rev:
        y1 = x1 + _f_conv_ref(x2, params_F)
        y2 = x2 + _f_conv_ref(y1, params_G)
    else:
        y2 = x2 - _f_conv_ref(x1, params_G)
        y1 = x1 - _f_conv_ref(y2, params_F)
    return jnp.transpose(jnp.concatenate([y1, y2], axis=-1), (0, 3, 1, 2))


# --------------------------- deterministic params --------------------------- #
def init_f_conv_params(key, c_in, c_out):
    """F_conv(in_channels=c_in, channels=c_out): hidden = c_out, 3x3, bias."""
    c_h = c_out
    ks = jax.random.split(key, 6)
    scale = 0.3
    w1 = scale * jax.random.normal(ks[0], (3, 3, c_in, c_h), jnp.float32)
    b1 = scale * jax.random.normal(ks[1], (1, c_h), jnp.float32)
    w2 = scale * jax.random.normal(ks[2], (3, 3, c_h, c_h), jnp.float32)
    b2 = scale * jax.random.normal(ks[3], (1, c_h), jnp.float32)
    w3 = scale * jax.random.normal(ks[4], (3, 3, c_h, c_out), jnp.float32)
    b3 = scale * jax.random.normal(ks[5], (1, c_out), jnp.float32)
    return (w1, b1, w2, b2, w3, b3)


# --------------------------------- main ------------------------------------- #
if __name__ == "__main__":
    key = jax.random.PRNGKey(0)
    kx, kF, kG = jax.random.split(key, 3)

    N, C, H, W = 2, 4, 16, 16
    split1 = C // 2
    split2 = C - split1

    x = jax.random.normal(kx, (N, C, H, W), jnp.float32)
    params_F = init_f_conv_params(kF, split2, split1)   # F: split2 -> split1
    params_G = init_f_conv_params(kG, split1, split2)   # G: split1 -> split2

    y_ref = rev_layer_ref(x, params_F, params_G, split1, rev=False)

    # (a) structural exactness: f32-matmul path vs pure-JAX reference (tight).
    y_f32 = rev_layer_forward(x, params_F, params_G, split1, rev=False,
                              matmul_dtype=jnp.float32)
    y_f32 = jax.block_until_ready(y_f32)
    assert y_f32.shape == (N, C, H, W)
    assert jnp.allclose(y_f32, y_ref, atol=1e-4, rtol=1e-4), \
        "f32 mismatch vs reference"

    # (b) default bf16-MXU path (native matmul dtype on v6e/v7x): looser tol.
    y = rev_layer_forward(x, params_F, params_G, split1, rev=False)
    y = jax.block_until_ready(y)
    assert jnp.allclose(y, y_ref, atol=1.5e-1, rtol=5e-2), \
        "bf16 mismatch vs reference"

    # (c) reversibility: forward(rev=True) inverts forward(rev=False).
    x_rec = rev_layer_forward(y, params_F, params_G, split1, rev=True)
    x_rec = jax.block_until_ready(x_rec)
    assert jnp.allclose(x_rec, x, atol=5e-2, rtol=1e-2), "inverse mismatch"

    _ = rev_layer_jacobian(x)  # trivial: zeros(batch)

    print("KERNEL_OK")
</pallas_src>

<mosaic_0001>
module attributes {stable_mosaic.version = 11 : i64} {
  func.func @kernel(%arg0: i32, %arg1: memref<4x512xf32, #tpu.memory_space<vmem>>, %arg2: memref<9x1x512xf32, #tpu.memory_space<vmem>>, %arg3: memref<6x2x19xf32, #tpu.memory_space<vmem>>, %arg4: memref<4x512xf32, #tpu.memory_space<vmem>>) attributes {dimension_semantics = [#tpu.dimension_semantics<parallel>], iteration_bounds = array<i64: 1>, scalar_prefetch = 0 : i64, scratch_operands = 0 : i64, tpu.core_type = #tpu.core_type<tc>, window_params = [{transform_indices = @transform_0, window_bounds = array<i64: 4, 512>}, {pipeline_mode = #tpu.pipeline_mode<synchronous>, transform_indices = @transform_1, window_bounds = array<i64: 9, 1, 512>}, {pipeline_mode = #tpu.pipeline_mode<synchronous>, transform_indices = @transform_2, window_bounds = array<i64: 6, 2, 19>}, {transform_indices = @transform_3, window_bounds = array<i64: 4, 512>}]} {
    %c0 = arith.constant 0 : index
    %c0_0 = arith.constant 0 : index
    %0 = vector.load %arg1[%c0, %c0_0] : memref<4x512xf32, #tpu.memory_space<vmem>>, vector<4x512xf32>
    %1 = vector.extract_strided_slice %0 {offsets = [0, 0], sizes = [2, 512], strides = [1, 1]} : vector<4x512xf32> to vector<2x512xf32>
    %2 = vector.extract_strided_slice %0 {offsets = [2, 0], sizes = [2, 512], strides = [1, 1]} : vector<4x512xf32> to vector<2x512xf32>
    %c0_1 = arith.constant 0 : index
    %c0_2 = arith.constant 0 : index
    %c0_3 = arith.constant 0 : index
    %3 = vector.load %arg2[%c0_1, %c0_2, %c0_3] : memref<9x1x512xf32, #tpu.memory_space<vmem>>, vector<1x1x512xf32>
    %4 = vector.shape_cast %3 : vector<1x1x512xf32> to vector<1x512xf32>
    %c1 = arith.constant 1 : index
    %c0_4 = arith.constant 0 : index
    %c0_5 = arith.constant 0 : index
    %5 = vector.load %arg2[%c1, %c0_4, %c0_5] : memref<9x1x512xf32, #tpu.memory_space<vmem>>, vector<1x1x512xf32>
    %6 = vector.shape_cast %5 : vector<1x1x512xf32> to vector<1x512xf32>
    %c2 = arith.constant 2 : index
    %c0_6 = arith.constant 0 : index
    %c0_7 = arith.constant 0 : index
    %7 = vector.load %arg2[%c2, %c0_6, %c0_7] : memref<9x1x512xf32, #tpu.memory_space<vmem>>, vector<1x1x512xf32>
    %8 = vector.shape_cast %7 : vector<1x1x512xf32> to vector<1x512xf32>
    %c3 = arith.constant 3 : index
    %c0_8 = arith.constant 0 : index
    %c0_9 = arith.constant 0 : index
    %9 = vector.load %arg2[%c3, %c0_8, %c0_9] : memref<9x1x512xf32, #tpu.memory_space<vmem>>, vector<1x1x512xf32>
    %10 = vector.shape_cast %9 : vector<1x1x512xf32> to vector<1x512xf32>
    %c5 = arith.constant 5 : index
    %c0_10 = arith.constant 0 : index
    %c0_11 = arith.constant 0 : index
    %11 = vector.load %arg2[%c5, %c0_10, %c0_11] : memref<9x1x512xf32, #tpu.memory_space<vmem>>, vector<1x1x512xf32>
    %12 = vector.shape_cast %11 : vector<1x1x512xf32> to vector<1x512xf32>
    %c6 = arith.constant 6 : index
    %c0_12 = arith.constant 0 : index
    %c0_13 = arith.constant 0 : index
    %13 = vector.load %arg2[%c6, %c0_12, %c0_13] : memref<9x1x512xf32, #tpu.memory_space<vmem>>, vector<1x1x512xf32>
    %14 = vector.shape_cast %13 : vector<1x1x512xf32> to vector<1x512xf32>
    %c7 = arith.constant 7 : index
    %c0_14 = arith.constant 0 : index
    %c0_15 = arith.constant 0 : index
    %15 = vector.load %arg2[%c7, %c0_14, %c0_15] : memref<9x1x512xf32, #tpu.memory_space<vmem>>, vector<1x1x512xf32>
    %16 = vector.shape_cast %15 : vector<1x1x512xf32> to vector<1x512xf32>
    %c8 = arith.constant 8 : index
    %c0_16 = arith.constant 0 : index
    %c0_17 = arith.constant 0 : index
    %17 = vector.load %arg2[%c8, %c0_16, %c0_17] : memref<9x1x512xf32, #tpu.memory_space<vmem>>, vector<1x1x512xf32>
    %18 = vector.shape_cast %17 : vector<1x1x512xf32> to vector<1x512xf32>
    %cst = arith.constant 1.000000e+00 : f32
    %19 = vector.broadcast %cst : f32 to vector<1x512xf32>
    %c17_i32 = arith.constant 17 : i32
    %20 = tpu.dynamic_rotate %2 by %c17_i32 dim 1 : vector<2x512xf32>, i32 -> vector<2x512xf32>
    %21 = vector.broadcast %4 : vector<1x512xf32> to vector<2x512xf32>
    %22 = arith.mulf %20, %21 : vector<2x512xf32>
    %c16_i32 = arith.constant 16 : i32
    %23 = tpu.dynamic_rotate %2 by %c16_i32 dim 1 : vector<2x512xf32>, i32 -> vector<2x512xf32>
    %24 = vector.broadcast %6 : vector<1x512xf32> to vector<2x512xf32>
    %25 = arith.mulf %23, %24 : vector<2x512xf32>
    %c15_i32 = arith.constant 15 : i32
    %26 = tpu.dynamic_rotate %2 by %c15_i32 dim 1 : vector<2x512xf32>, i32 -> vector<2x512xf32>
    %27 = vector.broadcast %8 : vector<1x512xf32> to vector<2x512xf32>
    %28 = arith.mulf %26, %27 : vector<2x512xf32>
    %c1_i32 = arith.constant 1 : i32
    %29 = tpu.dynamic_rotate %2 by %c1_i32 dim 1 : vector<2x512xf32>, i32 -> vector<2x512xf32>
    %30 = vector.broadcast %10 : vector<1x512xf32> to vector<2x512xf32>
    %31 = arith.mulf %29, %30 : vector<2x512xf32>
    %c511_i32 = arith.constant 511 : i32
    %32 = tpu.dynamic_rotate %2 by %c511_i32 dim 1 : vector<2x512xf32>, i32 -> vector<2x512xf32>
    %33 = vector.broadcast %12 : vector<1x512xf32> to vector<2x512xf32>
    %34 = arith.mulf %32, %33 : vector<2x512xf32>
    %c497_i32 = arith.constant 497 : i32
    %35 = tpu.dynamic_rotate %2 by %c497_i32 dim 1 : vector<2x512xf32>, i32 -> vector<2x512xf32>
    %36 = vector.broadcast %14 : vector<1x512xf32> to vector<2x512xf32>
    %37 = arith.mulf %35, %36 : vector<2x512xf32>
    %c496_i32 = arith.constant 496 : i32
    %38 = tpu.dynamic_rotate %2 by %c496_i32 dim 1 : vector<2x512xf32>, i32 -> vector<2x512xf32>
    %39 = vector.broadcast %16 : vector<1x512xf32> to vector<2x512xf32>
    %40 = arith.mulf %38, %39 : vector<2x512xf32>
    %c495_i32 = arith.constant 495 : i32
    %41 = tpu.dynamic_rotate %2 by %c495_i32 dim 1 : vector<2x512xf32>, i32 -> vector<2x512xf32>
    %42 = vector.broadcast %18 : vector<1x512xf32> to vector<2x512xf32>
    %43 = arith.mulf %41, %42 : vector<2x512xf32>
    %44 = tpu.concatenate %22, %25, %28, %31, %2, %34, %37, %40, %43, %19 in 0 : vector<2x512xf32>, vector<2x512xf32>, vector<2x512xf32>, vector<2x512xf32>, vector<2x512xf32>, vector<2x512xf32>, vector<2x512xf32>, vector<2x512xf32>, vector<2x512xf32>, vector<1x512xf32> -> vector<19x512xf32>
    %c0_18 = arith.constant 0 : index
    %c0_19 = arith.constant 0 : index
    %c0_20 = arith.constant 0 : index
    %45 = vector.load %arg3[%c0_18, %c0_19, %c0_20] : memref<6x2x19xf32, #tpu.memory_space<vmem>>, vector<1x2x19xf32>
    %46 = vector.shape_cast %45 : vector<1x2x19xf32> to vector<2x19xf32>
    %cst_21 = arith.constant dense<0.000000e+00> : vector<2x512xf32>
    %47 = tpu.matmul %46, %44, %cst_21 {dimension_numbers = #tpu.dot_dimension_numbers<[1], [0], [0], [1], [0, 0, 1, 1], [], []>} : vector<2x19xf32>, vector<19x512xf32>, vector<2x512xf32> -> vector<2x512xf32>
    %cst_22 = arith.constant 1.000000e-01 : f32
    %48 = vector.broadcast %cst_22 : f32 to vector<2x512xf32>
    %49 = arith.mulf %48, %47 : vector<2x512xf32>
    %50 = arith.maximumf %47, %49 : vector<2x512xf32>
    %c17_i32_23 = arith.constant 17 : i32
    %51 = tpu.dynamic_rotate %50 by %c17_i32_23 dim 1 : vector<2x512xf32>, i32 -> vector<2x512xf32>
    %52 = vector.broadcast %4 : vector<1x512xf32> to vector<2x512xf32>
    %53 = arith.mulf %51, %52 : vector<2x512xf32>
    %c16_i32_24 = arith.constant 16 : i32
    %54 = tpu.dynamic_rotate %50 by %c16_i32_24 dim 1 : vector<2x512xf32>, i32 -> vector<2x512xf32>
    %55 = vector.broadcast %6 : vector<1x512xf32> to vector<2x512xf32>
    %56 = arith.mulf %54, %55 : vector<2x512xf32>
    %c15_i32_25 = arith.constant 15 : i32
    %57 = tpu.dynamic_rotate %50 by %c15_i32_25 dim 1 : vector<2x512xf32>, i32 -> vector<2x512xf32>
    %58 = vector.broadcast %8 : vector<1x512xf32> to vector<2x512xf32>
    %59 = arith.mulf %57, %58 : vector<2x512xf32>
    %c1_i32_26 = arith.constant 1 : i32
    %60 = tpu.dynamic_rotate %50 by %c1_i32_26 dim 1 : vector<2x512xf32>, i32 -> vector<2x512xf32>
    %61 = vector.broadcast %10 : vector<1x512xf32> to vector<2x512xf32>
    %62 = arith.mulf %60, %61 : vector<2x512xf32>
    %c511_i32_27 = arith.constant 511 : i32
    %63 = tpu.dynamic_rotate %50 by %c511_i32_27 dim 1 : vector<2x512xf32>, i32 -> vector<2x512xf32>
    %64 = vector.broadcast %12 : vector<1x512xf32> to vector<2x512xf32>
    %65 = arith.mulf %63, %64 : vector<2x512xf32>
    %c497_i32_28 = arith.constant 497 : i32
    %66 = tpu.dynamic_rotate %50 by %c497_i32_28 dim 1 : vector<2x512xf32>, i32 -> vector<2x512xf32>
    %67 = vector.broadcast %14 : vector<1x512xf32> to vector<2x512xf32>
    %68 = arith.mulf %66, %67 : vector<2x512xf32>
    %c496_i32_29 = arith.constant 496 : i32
    %69 = tpu.dynamic_rotate %50 by %c496_i32_29 dim 1 : vector<2x512xf32>, i32 -> vector<2x512xf32>
    %70 = vector.broadcast %16 : vector<1x512xf32> to vector<2x512xf32>
    %71 = arith.mulf %69, %70 : vector<2x512xf32>
    %c495_i32_30 = arith.constant 495 : i32
    %72 = tpu.dynamic_rotate %50 by %c495_i32_30 dim 1 : vector<2x512xf32>, i32 -> vector<2x512xf32>
    %73 = vector.broadcast %18 : vector<1x512xf32> to vector<2x512xf32>
    %74 = arith.mulf %72, %73 : vector<2x512xf32>
    %75 = tpu.concatenate %53, %56, %59, %62, %50, %65, %68, %71, %74, %19 in 0 : vector<2x512xf32>, vector<2x512xf32>, vector<2x512xf32>, vector<2x512xf32>, vector<2x512xf32>, vector<2x512xf32>, vector<2x512xf32>, vector<2x512xf32>, vector<2x512xf32>, vector<1x512xf32> -> vector<19x512xf32>
    %c1_31 = arith.constant 1 : index
    %c0_32 = arith.constant 0 : index
    %c0_33 = arith.constant 0 : index
    %76 = vector.load %arg3[%c1_31, %c0_32, %c0_33] : memref<6x2x19xf32, #tpu.memory_space<vmem>>, vector<1x2x19xf32>
    %77 = vector.shape_cast %76 : vector<1x2x19xf32> to vector<2x19xf32>
    %cst_34 = arith.constant dense<0.000000e+00> : vector<2x512xf32>
    %78 = tpu.matmul %77, %75, %cst_34 {dimension_numbers = #tpu.dot_dimension_numbers<[1], [0], [0], [1], [0, 0, 1, 1], [], []>} : vector<2x19xf32>, vector<19x512xf32>, vector<2x512xf32> -> vector<2x512xf32>
    %cst_35 = arith.constant 1.000000e-01 : f32
    %79 = vector.broadcast %cst_35 : f32 to vector<2x512xf32>
    %80 = arith.mulf %79, %78 : vector<2x512xf32>
    %81 = arith.maximumf %78, %80 : vector<2x512xf32>
    %c17_i32_36 = arith.constant 17 : i32
    %82 = tpu.dynamic_rotate %81 by %c17_i32_36 dim 1 : vector<2x512xf32>, i32 -> vector<2x512xf32>
    %83 = vector.broadcast %4 : vector<1x512xf32> to vector<2x512xf32>
    %84 = arith.mulf %82, %83 : vector<2x512xf32>
    %c16_i32_37 = arith.constant 16 : i32
    %85 = tpu.dynamic_rotate %81 by %c16_i32_37 dim 1 : vector<2x512xf32>, i32 -> vector<2x512xf32>
    %86 = vector.broadcast %6 : vector<1x512xf32> to vector<2x512xf32>
    %87 = arith.mulf %85, %86 : vector<2x512xf32>
    %c15_i32_38 = arith.constant 15 : i32
    %88 = tpu.dynamic_rotate %81 by %c15_i32_38 dim 1 : vector<2x512xf32>, i32 -> vector<2x512xf32>
    %89 = vector.broadcast %8 : vector<1x512xf32> to vector<2x512xf32>
    %90 = arith.mulf %88, %89 : vector<2x512xf32>
    %c1_i32_39 = arith.constant 1 : i32
    %91 = tpu.dynamic_rotate %81 by %c1_i32_39 dim 1 : vector<2x512xf32>, i32 -> vector<2x512xf32>
    %92 = vector.broadcast %10 : vector<1x512xf32> to vector<2x512xf32>
    %93 = arith.mulf %91, %92 : vector<2x512xf32>
    %c511_i32_40 = arith.constant 511 : i32
    %94 = tpu.dynamic_rotate %81 by %c511_i32_40 dim 1 : vector<2x512xf32>, i32 -> vector<2x512xf32>
    %95 = vector.broadcast %12 : vector<1x512xf32> to vector<2x512xf32>
    %96 = arith.mulf %94, %95 : vector<2x512xf32>
    %c497_i32_41 = arith.constant 497 : i32
    %97 = tpu.dynamic_rotate %81 by %c497_i32_41 dim 1 : vector<2x512xf32>, i32 -> vector<2x512xf32>
    %98 = vector.broadcast %14 : vector<1x512xf32> to vector<2x512xf32>
    %99 = arith.mulf %97, %98 : vector<2x512xf32>
    %c496_i32_42 = arith.constant 496 : i32
    %100 = tpu.dynamic_rotate %81 by %c496_i32_42 dim 1 : vector<2x512xf32>, i32 -> vector<2x512xf32>
    %101 = vector.broadcast %16 : vector<1x512xf32> to vector<2x512xf32>
    %102 = arith.mulf %100, %101 : vector<2x512xf32>
    %c495_i32_43 = arith.constant 495 : i32
    %103 = tpu.dynamic_rotate %81 by %c495_i32_43 dim 1 : vector<2x512xf32>, i32 -> vector<2x512xf32>
    %104 = vector.broadcast %18 : vector<1x512xf32> to vector<2x512xf32>
    %105 = arith.mulf %103, %104 : vector<2x512xf32>
    %106 = tpu.concatenate %84, %87, %90, %93, %81, %96, %99, %102, %105, %19 in 0 : vector<2x512xf32>, vector<2x512xf32>, vector<2x512xf32>, vector<2x512xf32>, vector<2x512xf32>, vector<2x512xf32>, vector<2x512xf32>, vector<2x512xf32>, vector<2x512xf32>, vector<1x512xf32> -> vector<19x512xf32>
    %c2_44 = arith.constant 2 : index
    %c0_45 = arith.constant 0 : index
    %c0_46 = arith.constant 0 : index
    %107 = vector.load %arg3[%c2_44, %c0_45, %c0_46] : memref<6x2x19xf32, #tpu.memory_space<vmem>>, vector<1x2x19xf32>
    %108 = vector.shape_cast %107 : vector<1x2x19xf32> to vector<2x19xf32>
    %cst_47 = arith.constant dense<0.000000e+00> : vector<2x512xf32>
    %109 = tpu.matmul %108, %106, %cst_47 {dimension_numbers = #tpu.dot_dimension_numbers<[1], [0], [0], [1], [0, 0, 1, 1], [], []>} : vector<2x19xf32>, vector<19x512xf32>, vector<2x512xf32> -> vector<2x512xf32>
    %110 = arith.addf %1, %109 : vector<2x512xf32>
    %c17_i32_48 = arith.constant 17 : i32
    %111 = tpu.dynamic_rotate %110 by %c17_i32_48 dim 1 : vector<2x512xf32>, i32 -> vector<2x512xf32>
    %112 = vector.broadcast %4 : vector<1x512xf32> to vector<2x512xf32>
    %113 = arith.mulf %111, %112 : vector<2x512xf32>
    %c16_i32_49 = arith.constant 16 : i32
    %114 = tpu.dynamic_rotate %110 by %c16_i32_49 dim 1 : vector<2x512xf32>, i32 -> vector<2x512xf32>
    %115 = vector.broadcast %6 : vector<1x512xf32> to vector<2x512xf32>
    %116 = arith.mulf %114, %115 : vector<2x512xf32>
    %c15_i32_50 = arith.constant 15 : i32
    %117 = tpu.dynamic_rotate %110 by %c15_i32_50 dim 1 : vector<2x512xf32>, i32 -> vector<2x512xf32>
    %118 = vector.broadcast %8 : vector<1x512xf32> to vector<2x512xf32>
    %119 = arith.mulf %117, %118 : vector<2x512xf32>
    %c1_i32_51 = arith.constant 1 : i32
    %120 = tpu.dynamic_rotate %110 by %c1_i32_51 dim 1 : vector<2x512xf32>, i32 -> vector<2x512xf32>
    %121 = vector.broadcast %10 : vector<1x512xf32> to vector<2x512xf32>
    %122 = arith.mulf %120, %121 : vector<2x512xf32>
    %c511_i32_52 = arith.constant 511 : i32
    %123 = tpu.dynamic_rotate %110 by %c511_i32_52 dim 1 : vector<2x512xf32>, i32 -> vector<2x512xf32>
    %124 = vector.broadcast %12 : vector<1x512xf32> to vector<2x512xf32>
    %125 = arith.mulf %123, %124 : vector<2x512xf32>
    %c497_i32_53 = arith.constant 497 : i32
    %126 = tpu.dynamic_rotate %110 by %c497_i32_53 dim 1 : vector<2x512xf32>, i32 -> vector<2x512xf32>
    %127 = vector.broadcast %14 : vector<1x512xf32> to vector<2x512xf32>
    %128 = arith.mulf %126, %127 : vector<2x512xf32>
    %c496_i32_54 = arith.constant 496 : i32
    %129 = tpu.dynamic_rotate %110 by %c496_i32_54 dim 1 : vector<2x512xf32>, i32 -> vector<2x512xf32>
    %130 = vector.broadcast %16 : vector<1x512xf32> to vector<2x512xf32>
    %131 = arith.mulf %129, %130 : vector<2x512xf32>
    %c495_i32_55 = arith.constant 495 : i32
    %132 = tpu.dynamic_rotate %110 by %c495_i32_55 dim 1 : vector<2x512xf32>, i32 -> vector<2x512xf32>
    %133 = vector.broadcast %18 : vector<1x512xf32> to vector<2x512xf32>
    %134 = arith.mulf %132, %133 : vector<2x512xf32>
    %135 = tpu.concatenate %113, %116, %119, %122, %110, %125, %128, %131, %134, %19 in 0 : vector<2x512xf32>, vector<2x512xf32>, vector<2x512xf32>, vector<2x512xf32>, vector<2x512xf32>, vector<2x512xf32>, vector<2x512xf32>, vector<2x512xf32>, vector<2x512xf32>, vector<1x512xf32> -> vector<19x512xf32>
    %c3_56 = arith.constant 3 : index
    %c0_57 = arith.constant 0 : index
    %c0_58 = arith.constant 0 : index
    %136 = vector.load %arg3[%c3_56, %c0_57, %c0_58] : memref<6x2x19xf32, #tpu.memory_space<vmem>>, vector<1x2x19xf32>
    %137 = vector.shape_cast %136 : vector<1x2x19xf32> to vector<2x19xf32>
    %cst_59 = arith.constant dense<0.000000e+00> : vector<2x512xf32>
    %138 = tpu.matmul %137, %135, %cst_59 {dimension_numbers = #tpu.dot_dimension_numbers<[1], [0], [0], [1], [0, 0, 1, 1], [], []>} : vector<2x19xf32>, vector<19x512xf32>, vector<2x512xf32> -> vector<2x512xf32>
    %cst_60 = arith.constant 1.000000e-01 : f32
    %139 = vector.broadcast %cst_60 : f32 to vector<2x512xf32>
    %140 = arith.mulf %139, %138 : vector<2x512xf32>
    %141 = arith.maximumf %138, %140 : vector<2x512xf32>
    %c17_i32_61 = arith.constant 17 : i32
    %142 = tpu.dynamic_rotate %141 by %c17_i32_61 dim 1 : vector<2x512xf32>, i32 -> vector<2x512xf32>
    %143 = vector.broadcast %4 : vector<1x512xf32> to vector<2x512xf32>
    %144 = arith.mulf %142, %143 : vector<2x512xf32>
    %c16_i32_62 = arith.constant 16 : i32
    %145 = tpu.dynamic_rotate %141 by %c16_i32_62 dim 1 : vector<2x512xf32>, i32 -> vector<2x512xf32>
    %146 = vector.broadcast %6 : vector<1x512xf32> to vector<2x512xf32>
    %147 = arith.mulf %145, %146 : vector<2x512xf32>
    %c15_i32_63 = arith.constant 15 : i32
    %148 = tpu.dynamic_rotate %141 by %c15_i32_63 dim 1 : vector<2x512xf32>, i32 -> vector<2x512xf32>
    %149 = vector.broadcast %8 : vector<1x512xf32> to vector<2x512xf32>
    %150 = arith.mulf %148, %149 : vector<2x512xf32>
    %c1_i32_64 = arith.constant 1 : i32
    %151 = tpu.dynamic_rotate %141 by %c1_i32_64 dim 1 : vector<2x512xf32>, i32 -> vector<2x512xf32>
    %152 = vector.broadcast %10 : vector<1x512xf32> to vector<2x512xf32>
    %153 = arith.mulf %151, %152 : vector<2x512xf32>
    %c511_i32_65 = arith.constant 511 : i32
    %154 = tpu.dynamic_rotate %141 by %c511_i32_65 dim 1 : vector<2x512xf32>, i32 -> vector<2x512xf32>
    %155 = vector.broadcast %12 : vector<1x512xf32> to vector<2x512xf32>
    %156 = arith.mulf %154, %155 : vector<2x512xf32>
    %c497_i32_66 = arith.constant 497 : i32
    %157 = tpu.dynamic_rotate %141 by %c497_i32_66 dim 1 : vector<2x512xf32>, i32 -> vector<2x512xf32>
    %158 = vector.broadcast %14 : vector<1x512xf32> to vector<2x512xf32>
    %159 = arith.mulf %157, %158 : vector<2x512xf32>
    %c496_i32_67 = arith.constant 496 : i32
    %160 = tpu.dynamic_rotate %141 by %c496_i32_67 dim 1 : vector<2x512xf32>, i32 -> vector<2x512xf32>
    %161 = vector.broadcast %16 : vector<1x512xf32> to vector<2x512xf32>
    %162 = arith.mulf %160, %161 : vector<2x512xf32>
    %c495_i32_68 = arith.constant 495 : i32
    %163 = tpu.dynamic_rotate %141 by %c495_i32_68 dim 1 : vector<2x512xf32>, i32 -> vector<2x512xf32>
    %164 = vector.broadcast %18 : vector<1x512xf32> to vector<2x512xf32>
    %165 = arith.mulf %163, %164 : vector<2x512xf32>
    %166 = tpu.concatenate %144, %147, %150, %153, %141, %156, %159, %162, %165, %19 in 0 : vector<2x512xf32>, vector<2x512xf32>, vector<2x512xf32>, vector<2x512xf32>, vector<2x512xf32>, vector<2x512xf32>, vector<2x512xf32>, vector<2x512xf32>, vector<2x512xf32>, vector<1x512xf32> -> vector<19x512xf32>
    %c4 = arith.constant 4 : index
    %c0_69 = arith.constant 0 : index
    %c0_70 = arith.constant 0 : index
    %167 = vector.load %arg3[%c4, %c0_69, %c0_70] : memref<6x2x19xf32, #tpu.memory_space<vmem>>, vector<1x2x19xf32>
    %168 = vector.shape_cast %167 : vector<1x2x19xf32> to vector<2x19xf32>
    %cst_71 = arith.constant dense<0.000000e+00> : vector<2x512xf32>
    %169 = tpu.matmul %168, %166, %cst_71 {dimension_numbers = #tpu.dot_dimension_numbers<[1], [0], [0], [1], [0, 0, 1, 1], [], []>} : vector<2x19xf32>, vector<19x512xf32>, vector<2x512xf32> -> vector<2x512xf32>
    %cst_72 = arith.constant 1.000000e-01 : f32
    %170 = vector.broadcast %cst_72 : f32 to vector<2x512xf32>
    %171 = arith.mulf %170, %169 : vector<2x512xf32>
    %172 = arith.maximumf %169, %171 : vector<2x512xf32>
    %c17_i32_73 = arith.constant 17 : i32
    %173 = tpu.dynamic_rotate %172 by %c17_i32_73 dim 1 : vector<2x512xf32>, i32 -> vector<2x512xf32>
    %174 = vector.broadcast %4 : vector<1x512xf32> to vector<2x512xf32>
    %175 = arith.mulf %173, %174 : vector<2x512xf32>
    %c16_i32_74 = arith.constant 16 : i32
    %176 = tpu.dynamic_rotate %172 by %c16_i32_74 dim 1 : vector<2x512xf32>, i32 -> vector<2x512xf32>
    %177 = vector.broadcast %6 : vector<1x512xf32> to vector<2x512xf32>
    %178 = arith.mulf %176, %177 : vector<2x512xf32>
    %c15_i32_75 = arith.constant 15 : i32
    %179 = tpu.dynamic_rotate %172 by %c15_i32_75 dim 1 : vector<2x512xf32>, i32 -> vector<2x512xf32>
    %180 = vector.broadcast %8 : vector<1x512xf32> to vector<2x512xf32>
    %181 = arith.mulf %179, %180 : vector<2x512xf32>
    %c1_i32_76 = arith.constant 1 : i32
    %182 = tpu.dynamic_rotate %172 by %c1_i32_76 dim 1 : vector<2x512xf32>, i32 -> vector<2x512xf32>
    %183 = vector.broadcast %10 : vector<1x512xf32> to vector<2x512xf32>
    %184 = arith.mulf %182, %183 : vector<2x512xf32>
    %c511_i32_77 = arith.constant 511 : i32
    %185 = tpu.dynamic_rotate %172 by %c511_i32_77 dim 1 : vector<2x512xf32>, i32 -> vector<2x512xf32>
    %186 = vector.broadcast %12 : vector<1x512xf32> to vector<2x512xf32>
    %187 = arith.mulf %185, %186 : vector<2x512xf32>
    %c497_i32_78 = arith.constant 497 : i32
    %188 = tpu.dynamic_rotate %172 by %c497_i32_78 dim 1 : vector<2x512xf32>, i32 -> vector<2x512xf32>
    %189 = vector.broadcast %14 : vector<1x512xf32> to vector<2x512xf32>
    %190 = arith.mulf %188, %189 : vector<2x512xf32>
    %c496_i32_79 = arith.constant 496 : i32
    %191 = tpu.dynamic_rotate %172 by %c496_i32_79 dim 1 : vector<2x512xf32>, i32 -> vector<2x512xf32>
    %192 = vector.broadcast %16 : vector<1x512xf32> to vector<2x512xf32>
    %193 = arith.mulf %191, %192 : vector<2x512xf32>
    %c495_i32_80 = arith.constant 495 : i32
    %194 = tpu.dynamic_rotate %172 by %c495_i32_80 dim 1 : vector<2x512xf32>, i32 -> vector<2x512xf32>
    %195 = vector.broadcast %18 : vector<1x512xf32> to vector<2x512xf32>
    %196 = arith.mulf %194, %195 : vector<2x512xf32>
    %197 = tpu.concatenate %175, %178, %181, %184, %172, %187, %190, %193, %196, %19 in 0 : vector<2x512xf32>, vector<2x512xf32>, vector<2x512xf32>, vector<2x512xf32>, vector<2x512xf32>, vector<2x512xf32>, vector<2x512xf32>, vector<2x512xf32>, vector<2x512xf32>, vector<1x512xf32> -> vector<19x512xf32>
    %c5_81 = arith.constant 5 : index
    %c0_82 = arith.constant 0 : index
    %c0_83 = arith.constant 0 : index
    %198 = vector.load %arg3[%c5_81, %c0_82, %c0_83] : memref<6x2x19xf32, #tpu.memory_space<vmem>>, vector<1x2x19xf32>
    %199 = vector.shape_cast %198 : vector<1x2x19xf32> to vector<2x19xf32>
    %cst_84 = arith.constant dense<0.000000e+00> : vector<2x512xf32>
    %200 = tpu.matmul %199, %197, %cst_84 {dimension_numbers = #tpu.dot_dimension_numbers<[1], [0], [0], [1], [0, 0, 1, 1], [], []>} : vector<2x19xf32>, vector<19x512xf32>, vector<2x512xf32> -> vector<2x512xf32>
    %201 = arith.addf %2, %200 : vector<2x512xf32>
    %202 = tpu.concatenate %110, %201 in 0 : vector<2x512xf32>, vector<2x512xf32> -> vector<4x512xf32>
    %c0_85 = arith.constant 0 : index
    %c0_86 = arith.constant 0 : index
    %203 = vector.load %arg4[%c0_85, %c0_86] : memref<4x512xf32, #tpu.memory_space<vmem>>, vector<4x512xf32>
    tpu.vector_store %arg4[%c0_85, %c0_86], %202 {strides = array<i32>} : memref<4x512xf32, #tpu.memory_space<vmem>>, vector<4x512xf32>,
    return
  }
  func.func @transform_0(%arg0: i32) -> (i32, i32) {
    %c0_i32 = arith.constant 0 : i32
    %c0_i32_0 = arith.constant 0 : i32
    return %c0_i32, %arg0 : i32, i32
  }
  func.func @transform_1(%arg0: i32) -> (i32, i32, i32) {
    %c0_i32 = arith.constant 0 : i32
    %c0_i32_0 = arith.constant 0 : i32
    %c0_i32_1 = arith.constant 0 : i32
    %c0_i32_2 = arith.constant 0 : i32
    return %c0_i32, %c0_i32_0, %c0_i32_1 : i32, i32, i32
  }
  func.func @transform_2(%arg0: i32) -> (i32, i32, i32) {
    %c0_i32 = arith.constant 0 : i32
    %c0_i32_0 = arith.constant 0 : i32
    %c0_i32_1 = arith.constant 0 : i32
    %c0_i32_2 = arith.constant 0 : i32
    return %c0_i32, %c0_i32_0, %c0_i32_1 : i32, i32, i32
  }
  func.func @transform_3(%arg0: i32) -> (i32, i32) {
    %c0_i32 = arith.constant 0 : i32
    %c0_i32_0 = arith.constant 0 : i32
    return %c0_i32, %arg0 : i32, i32
  }
}

</mosaic_0001>

<llo_original>
// kernel: tpu_custom_call.1
$region0: #{tpu_custom_call.1}
  #allocation0 [shape = 'u32[]', space=smem, size = 0x4, offset = 0x4, fixed_abs, tag = 'smem constant byte address 0x4 - core index']
  #allocation1 [shape = 'u32[72,128]{1,0:T(1,128)}', space=vmem, size = 0x9000, scoped, tag = 'internal scratch']
  %s0 = inlined_call_operand.hbm [shape: f32[4,512], index: 0, kind: input, shape index: {}]
  %s1 = inlined_call_operand.hbm [shape: f32[9,1,512], index: 1, kind: input, shape index: {}]
  %s2 = inlined_call_operand.hbm [shape: f32[6,2,19], index: 2, kind: input, shape index: {}]
  %s3 = inlined_call_operand.hbm [shape: f32[4,512], index: 3, kind: output, shape index: {}]
  %s4 = sld [smem:[#allocation0]]
  $region34: #{tpu_custom_call.1} parent=0
    _
  %s6 = ssub.s32 1, %s4
  %s7 = scalar_select 0, %s6, %s4
  $region1: #{tpu_custom_call.1} parent=0
    #allocation2 [shape = 'u8[8192]{0}', space=vmem, size = 0x2000, scoped, tag = 'input window, operand 0, single buffered']
    #allocation3 [shape = 's32[1]{0}', space=sflag, size = 0x4, scoped, tag = 'scoped memory for tpu_custom_call.1']
    #allocation4 [shape = 's32[1]{0}', space=sflag, size = 0x4, scoped, tag = 'scoped memory for tpu_custom_call.1']
    #allocation5 [shape = 'u8[18432]{0}', space=vmem, size = 0x4800, scoped, tag = 'input window, operand 1, single buffered']
    #allocation6 [shape = 's32[1]{0}', space=sflag, size = 0x4, scoped, tag = 'scoped memory for tpu_custom_call.1']
    #allocation7 [shape = 'u8[6144]{0}', space=vmem, size = 0x1800, scoped, tag = 'input window, operand 2, single buffered']
    #allocation8 [shape = 'u8[8192]{0}', space=vmem, size = 0x2000, scoped, tag = 'output window, operand 0, single buffered']
    %8 = vsyncpa [#allocation3], 0
    %9 = vsyncpa [#allocation6], 0
    %10 = vsyncpa [#allocation4], 0
    // Predicated region
    $region2: #{tpu_custom_call.1} parent=1 // pred_check
      _
    $region3: #{tpu_custom_call.1} parent=1 // pred_check_branch
      %12 = sbr.rel (0) target = $region5
    $region4: #{tpu_custom_call.1} parent=1 // pred_region
      %14 = vsyncadd [#allocation3], 0
      %s16 = sshll.u32 %s0, 4
      %s17 = int_to_ptr.hbm [resolvable:$true] %s16
      %s18 = sshll.u32 [#allocation2], 4
      %s19 = int_to_ptr.vmem [resolvable:$true] %s18
      %21 = dma.hbm_to_vmem [thread:$0]  %s17, 256, %s19, [#allocation3]
    $region5: #{tpu_custom_call.1} parent=1 // pred_fallthru
      _
    // Predicated region
    $region6: #{tpu_custom_call.1} parent=1 // pred_check
      _
    $region7: #{tpu_custom_call.1} parent=1 // pred_check_branch
      %23 = sbr.rel (0) target = $region9
    $region8: #{tpu_custom_call.1} parent=1 // pred_region
      %25 = vsyncadd [#allocation6], 0
      %s26 = sshll.u32 %s1, 4
      %s27 = int_to_ptr.hbm [resolvable:$true] %s26
      %s28 = sshll.u32 [#allocation5], 4
      %s29 = int_to_ptr.vmem [resolvable:$true] %s28
      %34 = dma.hbm_to_vmem [thread:$0]  %s27, 576, %s29, [#allocation6], 64, 64, 4
    $region9: #{tpu_custom_call.1} parent=1 // pred_fallthru
      _
    // Predicated region
    $region10: #{tpu_custom_call.1} parent=1 // pred_check
      _
    $region11: #{tpu_custom_call.1} parent=1 // pred_check_branch
      %36 = sbr.rel (0) target = $region13
    $region12: #{tpu_custom_call.1} parent=1 // pred_region
      %38 = vsyncadd [#allocation6], 0
      %s39 = sshll.u32 %s2, 4
      %s40 = int_to_ptr.hbm [resolvable:$true] %s39
      %s41 = sshll.u32 [#allocation7], 4
      %s42 = int_to_ptr.vmem [resolvable:$true] %s41
      %47 = dma.hbm_to_vmem [thread:$0]  %s40, 192, %s42, [#allocation6], 32, 32, 2
    $region13: #{tpu_custom_call.1} parent=1 // pred_fallthru
      _
    // Predicated region
    $region14: #{tpu_custom_call.1} parent=1 // pred_check
      _
    $region15: #{tpu_custom_call.1} parent=1 // pred_check_branch
      %49 = sbr.rel (0) target = $region17
    $region16: #{tpu_custom_call.1} parent=1 // pred_region
      %51 = dma.done [#allocation3], 256
    $region17: #{tpu_custom_call.1} parent=1 // pred_fallthru
      _
    // Predicated region
    $region18: #{tpu_custom_call.1} parent=1 // pred_check
      _
    $region19: #{tpu_custom_call.1} parent=1 // pred_check_branch
      %53 = sbr.rel (0) target = $region21
    $region20: #{tpu_custom_call.1} parent=1 // pred_region
      %55 = dma.done [#allocation6], 576
    $region21: #{tpu_custom_call.1} parent=1 // pred_fallthru
      _
    // Predicated region
    $region22: #{tpu_custom_call.1} parent=1 // pred_check
      _
    $region23: #{tpu_custom_call.1} parent=1 // pred_check_branch
      %57 = sbr.rel (0) target = $region25
    $region24: #{tpu_custom_call.1} parent=1 // pred_region
      %59 = dma.done [#allocation6], 192
    $region25: #{tpu_custom_call.1} parent=1 // pred_fallthru
      _
    %v60 = vld [vmem:[#allocation2] sm:$0xff]
    %v61 = vld [vmem:[#allocation2 + $0x8] sm:$0xff]
    %v62 = vld [vmem:[#allocation5] sm:$0xf]
    %s63 = scalar_lea.vmem [#allocation5], 4
    %v64 = vld [vmem:[%s63] sm:$0xf]
    %s65 = scalar_lea.vmem [#allocation5], 8
    %v66 = vld [vmem:[%s65] sm:$0xf]
    %s67 = scalar_lea.vmem [#allocation5], 12
    %v68 = vld [vmem:[%s67] sm:$0xf]
    %s69 = scalar_lea.vmem [#allocation5], 20
    %v70 = vld [vmem:[%s69] sm:$0xf]
    %s71 = scalar_lea.vmem [#allocation5], 24
    %v72 = vld [vmem:[%s71] sm:$0xf]
    %s73 = scalar_lea.vmem [#allocation5], 28
    %v74 = vld [vmem:[%s73] sm:$0xf]
    %s75 = scalar_lea.vmem [#allocation5], 32
    %v76 = vld [vmem:[%s75] sm:$0xf]
    %79 = vst [vmem:[#allocation1] ss:$2 sm:$0xff] %v60
    %s80 = scalar_lea.vmem [#allocation1], 16
    %81 = vst [vmem:[%s80] ss:$2 sm:$0xff] %v61
    %v82 = vld.sshfl [vmem:[#allocation1] sm:$0xff pattern:$0x75316420]
    %v83 = vld.sshfl [vmem:[#allocation1 + $0x8] sm:$0xff pattern:$0x75316420]
    %v84 = vld.sshfl [vmem:[#allocation1 + $0x10] sm:$0xff pattern:$0x75316420]
    %v85 = vld.sshfl [vmem:[#allocation1 + $0x18] sm:$0xff pattern:$0x75316420]
    %v86 = vrot.slane %v82, 2
    %v87 = vrot.slane %v83, 2
    %v88 = vrot.slane %v84, 2
    %v89 = vrot.slane %v85, 2
    %94 = vrot.lane.b32.xlu0 %v86, 17
    %v95 = vpop.permute.xlu0 %94
    %96 = vrot.lane.b32.xlu0 %v87, 17
    %v97 = vpop.permute.xlu0 %96
    %98 = vrot.lane.b32.xlu0 %v88, 17
    %v99 = vpop.permute.xlu0 %98
    %100 = vrot.lane.b32.xlu0 %v89, 17
    %v101 = vpop.permute.xlu0 %100
    %v102 = vlaneseq
    %v103 = vand.u32 %v102, 127
    %vm104 = vcmp.lt.s32.totalorder %v103, 17
    %v105 = vsel %vm104, %v99, %v101
    %v106 = vsel %vm104, %v97, %v99
    %v107 = vsel %vm104, %v95, %v97
    %v108 = vsel %vm104, %v101, %v95
    %v110 = vperm.slane %v62, 0
    %v111 = vperm.slane %v62, 1
    %v112 = vperm.slane %v62, 2
    %v113 = vperm.slane %v62, 3
    %v118 = vmul.f32 %v108, %v110
    %v119 = vmul.f32 %v107, %v111
    %v120 = vmul.f32 %v106, %v112
    %v121 = vmul.f32 %v105, %v113
    %122 = vst [vmem:[#allocation1] ss:$2 sm:$0xff] %v60
    %s123 = scalar_lea.vmem [#allocation1], 16
    %124 = vst [vmem:[%s123] ss:$2 sm:$0xff] %v61
    %v125 = vld.sshfl [vmem:[#allocation1] sm:$0xff pattern:$0x75316420]
    %v126 = vld.sshfl [vmem:[#allocation1 + $0x8] sm:$0xff pattern:$0x75316420]
    %v127 = vld.sshfl [vmem:[#allocation1 + $0x10] sm:$0xff pattern:$0x75316420]
    %v128 = vld.sshfl [vmem:[#allocation1 + $0x18] sm:$0xff pattern:$0x75316420]
    %v129 = vrot.slane %v125, 2
    %v130 = vrot.slane %v126, 2
    %v131 = vrot.slane %v127, 2
    %v132 = vrot.slane %v128, 2
    %137 = vrot.lane.b32.xlu0 %v129, 16
    %v138 = vpop.permute.xlu0 %137
    %139 = vrot.lane.b32.xlu0 %v130, 16
    %v140 = vpop.permute.xlu0 %139
    %141 = vrot.lane.b32.xlu0 %v131, 16
    %v142 = vpop.permute.xlu0 %141
    %143 = vrot.lane.b32.xlu0 %v132, 16
    %v144 = vpop.permute.xlu0 %143
    %vm145 = vcmp.lt.s32.totalorder %v103, 16
    %v146 = vsel %vm145, %v142, %v144
    %v147 = vsel %vm145, %v140, %v142
    %v148 = vsel %vm145, %v138, %v140
    %v149 = vsel %vm145, %v144, %v138
    %v151 = vperm.slane %v64, 0
    %v152 = vperm.slane %v64, 1
    %v153 = vperm.slane %v64, 2
    %v154 = vperm.slane %v64, 3
    %v159 = vmul.f32 %v149, %v151
    %v160 = vmul.f32 %v148, %v152
    %v161 = vmul.f32 %v147, %v153
    %v162 = vmul.f32 %v146, %v154
    %163 = vst [vmem:[#allocation1] ss:$2 sm:$0xff] %v60
    %s164 = scalar_lea.vmem [#allocation1], 16
    %165 = vst [vmem:[%s164] ss:$2 sm:$0xff] %v61
    %v166 = vld.sshfl [vmem:[#allocation1] sm:$0xff pattern:$0x75316420]
    %v167 = vld.sshfl [vmem:[#allocation1 + $0x8] sm:$0xff pattern:$0x75316420]
    %v168 = vld.sshfl [vmem:[#allocation1 + $0x10] sm:$0xff pattern:$0x75316420]
    %v169 = vld.sshfl [vmem:[#allocation1 + $0x18] sm:$0xff pattern:$0x75316420]
    %v170 = vrot.slane %v166, 2
    %v171 = vrot.slane %v167, 2
    %v172 = vrot.slane %v168, 2
    %v173 = vrot.slane %v169, 2
    %178 = vrot.lane.b32.xlu0 %v170, 15
    %v179 = vpop.permute.xlu0 %178
    %180 = vrot.lane.b32.xlu0 %v171, 15
    %v181 = vpop.permute.xlu0 %180
    %182 = vrot.lane.b32.xlu0 %v172, 15
    %v183 = vpop.permute.xlu0 %182
    %184 = vrot.lane.b32.xlu0 %v173, 15
    %v185 = vpop.permute.xlu0 %184
    %vm186 = vcmp.lt.s32.totalorder %v103, 15
    %v187 = vsel %vm186, %v183, %v185
    %v188 = vsel %vm186, %v181, %v183
    %v189 = vsel %vm186, %v179, %v181
    %v190 = vsel %vm186, %v185, %v179
    %v192 = vperm.slane %v66, 0
    %v193 = vperm.slane %v66, 1
    %v194 = vperm.slane %v66, 2
    %v195 = vperm.slane %v66, 3
    %v200 = vmul.f32 %v190, %v192
    %v201 = vmul.f32 %v189, %v193
    %v202 = vmul.f32 %v188, %v194
    %v203 = vmul.f32 %v187, %v195
    %204 = vst [vmem:[#allocation1] ss:$2 sm:$0xff] %v60
    %s205 = scalar_lea.vmem [#allocation1], 16
    %206 = vst [vmem:[%s205] ss:$2 sm:$0xff] %v61
    %v207 = vld.sshfl [vmem:[#allocation1] sm:$0xff pattern:$0x75316420]
    %v208 = vld.sshfl [vmem:[#allocation1 + $0x8] sm:$0xff pattern:$0x75316420]
    %v209 = vld.sshfl [vmem:[#allocation1 + $0x10] sm:$0xff pattern:$0x75316420]
    %v210 = vld.sshfl [vmem:[#allocation1 + $0x18] sm:$0xff pattern:$0x75316420]
    %v211 = vrot.slane %v207, 2
    %v212 = vrot.slane %v208, 2
    %v213 = vrot.slane %v209, 2
    %v214 = vrot.slane %v210, 2
    %219 = vrot.lane.b32.xlu0 %v211, 1
    %v220 = vpop.permute.xlu0 %219
    %221 = vrot.lane.b32.xlu0 %v212, 1
    %v222 = vpop.permute.xlu0 %221
    %223 = vrot.lane.b32.xlu0 %v213, 1
    %v224 = vpop.permute.xlu0 %223
    %225 = vrot.lane.b32.xlu0 %v214, 1
    %v226 = vpop.permute.xlu0 %225
    %vm227 = vcmp.lt.s32.totalorder %v103, 1
    %v228 = vsel %vm227, %v224, %v226
    %v229 = vsel %vm227, %v222, %v224
    %v230 = vsel %vm227, %v220, %v222
    %v231 = vsel %vm227, %v226, %v220
    %v233 = vperm.slane %v68, 0
    %v234 = vperm.slane %v68, 1
    %v235 = vperm.slane %v68, 2
    %v236 = vperm.slane %v68, 3
    %v241 = vmul.f32 %v231, %v233
    %v242 = vmul.f32 %v230, %v234
    %v243 = vmul.f32 %v229, %v235
    %v244 = vmul.f32 %v228, %v236
    %245 = vst [vmem:[#allocation1] ss:$2 sm:$0xff] %v60
    %s246 = scalar_lea.vmem [#allocation1], 16
    %247 = vst [vmem:[%s246] ss:$2 sm:$0xff] %v61
    %v248 = vld.sshfl [vmem:[#allocation1] sm:$0xff pattern:$0x75316420]
    %v249 = vld.sshfl [vmem:[#allocation1 + $0x8] sm:$0xff pattern:$0x75316420]
    %v250 = vld.sshfl [vmem:[#allocation1 + $0x10] sm:$0xff pattern:$0x75316420]
    %v251 = vld.sshfl [vmem:[#allocation1 + $0x18] sm:$0xff pattern:$0x75316420]
    %v252 = vrot.slane %v248, 2
    %v253 = vrot.slane %v249, 2
    %v254 = vrot.slane %v250, 2
    %v255 = vrot.slane %v251, 2
    %260 = vrot.lane.b32.xlu0 %v252, 127
    %v261 = vpop.permute.xlu0 %260
    %262 = vrot.lane.b32.xlu0 %v253, 127
    %v263 = vpop.permute.xlu0 %262
    %264 = vrot.lane.b32.xlu0 %v254, 127
    %v265 = vpop.permute.xlu0 %264
    %266 = vrot.lane.b32.xlu0 %v255, 127
    %v267 = vpop.permute.xlu0 %266
    %vm268 = vcmp.lt.s32.totalorder %v103, 127
    %v269 = vsel %vm268, %v265, %v267
    %v270 = vsel %vm268, %v263, %v265
    %v271 = vsel %vm268, %v261, %v263
    %v272 = vsel %vm268, %v267, %v261
    %v274 = vperm.slane %v70, 0
    %v275 = vperm.slane %v70, 1
    %v276 = vperm.slane %v70, 2
    %v277 = vperm.slane %v70, 3
    %v282 = vmul.f32 %v271, %v274
    %v283 = vmul.f32 %v270, %v275
    %v284 = vmul.f32 %v269, %v276
    %v285 = vmul.f32 %v272, %v277
    %286 = vst [vmem:[#allocation1] ss:$2 sm:$0xff] %v60
    %s287 = scalar_lea.vmem [#allocation1], 16
    %288 = vst [vmem:[%s287] ss:$2 sm:$0xff] %v61
    %v289 = vld.sshfl [vmem:[#allocation1] sm:$0xff pattern:$0x75316420]
    %v290 = vld.sshfl [vmem:[#allocation1 + $0x8] sm:$0xff pattern:$0x75316420]
    %v291 = vld.sshfl [vmem:[#allocation1 + $0x10] sm:$0xff pattern:$0x75316420]
    %v292 = vld.sshfl [vmem:[#allocation1 + $0x18] sm:$0xff pattern:$0x75316420]
    %v293 = vrot.slane %v289, 2
    %v294 = vrot.slane %v290, 2
    %v295 = vrot.slane %v291, 2
    %v296 = vrot.slane %v292, 2
    %301 = vrot.lane.b32.xlu0 %v293, 113
    %v302 = vpop.permute.xlu0 %301
    %303 = vrot.lane.b32.xlu0 %v294, 113
    %v304 = vpop.permute.xlu0 %303
    %305 = vrot.lane.b32.xlu0 %v295, 113
    %v306 = vpop.permute.xlu0 %305
    %307 = vrot.lane.b32.xlu0 %v296, 113
    %v308 = vpop.permute.xlu0 %307
    %vm309 = vcmp.lt.s32.totalorder %v103, 113
    %v310 = vsel %vm309, %v306, %v308
    %v311 = vsel %vm309, %v304, %v306
    %v312 = vsel %vm309, %v302, %v304
    %v313 = vsel %vm309, %v308, %v302
    %v315 = vperm.slane %v72, 0
    %v316 = vperm.slane %v72, 1
    %v317 = vperm.slane %v72, 2
    %v318 = vperm.slane %v72, 3
    %v323 = vmul.f32 %v312, %v315
    %v324 = vmul.f32 %v311, %v316
    %v325 = vmul.f32 %v310, %v317
    %v326 = vmul.f32 %v313, %v318
    %327 = vst [vmem:[#allocation1] ss:$2 sm:$0xff] %v60
    %s328 = scalar_lea.vmem [#allocation1], 16
    %329 = vst [vmem:[%s328] ss:$2 sm:$0xff] %v61
    %v330 = vld.sshfl [vmem:[#allocation1] sm:$0xff pattern:$0x75316420]
    %v331 = vld.sshfl [vmem:[#allocation1 + $0x8] sm:$0xff pattern:$0x75316420]
    %v332 = vld.sshfl [vmem:[#allocation1 + $0x10] sm:$0xff pattern:$0x75316420]
    %v333 = vld.sshfl [vmem:[#allocation1 + $0x18] sm:$0xff pattern:$0x75316420]
    %v334 = vrot.slane %v330, 2
    %v335 = vrot.slane %v331, 2
    %v336 = vrot.slane %v332, 2
    %v337 = vrot.slane %v333, 2
    %342 = vrot.lane.b32.xlu0 %v334, 112
    %v343 = vpop.permute.xlu0 %342
    %344 = vrot.lane.b32.xlu0 %v335, 112
    %v345 = vpop.permute.xlu0 %344
    %346 = vrot.lane.b32.xlu0 %v336, 112
    %v347 = vpop.permute.xlu0 %346
    %348 = vrot.lane.b32.xlu0 %v337, 112
    %v349 = vpop.permute.xlu0 %348
    %vm350 = vcmp.lt.s32.totalorder %v103, 112
    %v351 = vsel %vm350, %v347, %v349
    %v352 = vsel %vm350, %v345, %v347
    %v353 = vsel %vm350, %v343, %v345
    %v354 = vsel %vm350, %v349, %v343
    %v356 = vperm.slane %v74, 0
    %v357 = vperm.slane %v74, 1
    %v358 = vperm.slane %v74, 2
    %v359 = vperm.slane %v74, 3
    %v364 = vmul.f32 %v353, %v356
    %v365 = vmul.f32 %v352, %v357
    %v366 = vmul.f32 %v351, %v358
    %v367 = vmul.f32 %v354, %v359
    %368 = vst [vmem:[#allocation1] ss:$2 sm:$0xff] %v60
    %s369 = scalar_lea.vmem [#allocation1], 16
    %370 = vst [vmem:[%s369] ss:$2 sm:$0xff] %v61
    %v371 = vld.sshfl [vmem:[#allocation1] sm:$0xff pattern:$0x75316420]
    %v372 = vld.sshfl [vmem:[#allocation1 + $0x8] sm:$0xff pattern:$0x75316420]
    %v373 = vld.sshfl [vmem:[#allocation1 + $0x10] sm:$0xff pattern:$0x75316420]
    %v374 = vld.sshfl [vmem:[#allocation1 + $0x18] sm:$0xff pattern:$0x75316420]
    %v375 = vrot.slane %v371, 2
    %v376 = vrot.slane %v372, 2
    %v377 = vrot.slane %v373, 2
    %v378 = vrot.slane %v374, 2
    %383 = vrot.lane.b32.xlu0 %v375, 111
    %v384 = vpop.permute.xlu0 %383
    %385 = vrot.lane.b32.xlu0 %v376, 111
    %v386 = vpop.permute.xlu0 %385
    %387 = vrot.lane.b32.xlu0 %v377, 111
    %v388 = vpop.permute.xlu0 %387
    %389 = vrot.lane.b32.xlu0 %v378, 111
    %v390 = vpop.permute.xlu0 %389
    %vm391 = vcmp.lt.s32.totalorder %v103, 111
    %v392 = vsel %vm391, %v388, %v390
    %v393 = vsel %vm391, %v386, %v388
    %v394 = vsel %vm391, %v384, %v386
    %v395 = vsel %vm391, %v390, %v384
    %v397 = vperm.slane %v76, 0
    %v398 = vperm.slane %v76, 1
    %v399 = vperm.slane %v76, 2
    %v400 = vperm.slane %v76, 3
    %v405 = vmul.f32 %v394, %v397
    %v406 = vmul.f32 %v393, %v398
    %v407 = vmul.f32 %v392, %v399
    %v408 = vmul.f32 %v395, %v400
    %v413 = vrot.slane %v159, 6
    %v414 = vrot.slane %v160, 6
    %v415 = vrot.slane %v161, 6
    %v416 = vrot.slane %v162, 6
    %v425 = vrot.slane %v200, 4
    %v426 = vrot.slane %v201, 4
    %v427 = vrot.slane %v202, 4
    %v428 = vrot.slane %v203, 4
    %v437 = vrot.slane %v241, 2
    %v438 = vrot.slane %v242, 2
    %v439 = vrot.slane %v243, 2
    %v440 = vrot.slane %v244, 2
    %445 = vst [vmem:[#allocation1] ss:$2 sm:$0xff] %v60
    %s446 = scalar_lea.vmem [#allocation1], 16
    %447 = vst [vmem:[%s446] ss:$2 sm:$0xff] %v61
    %v448 = vld.sshfl [vmem:[#allocation1] sm:$0xff pattern:$0x75316420]
    %v449 = vld.sshfl [vmem:[#allocation1 + $0x8] sm:$0xff pattern:$0x75316420]
    %v450 = vld.sshfl [vmem:[#allocation1 + $0x10] sm:$0xff pattern:$0x75316420]
    %v451 = vld.sshfl [vmem:[#allocation1 + $0x18] sm:$0xff pattern:$0x75316420]
    %v452 = vrot.slane %v448, 2
    %v453 = vrot.slane %v449, 2
    %v454 = vrot.slane %v450, 2
    %v455 = vrot.slane %v451, 2
    %v464 = vrot.slane %v282, 6
    %v465 = vrot.slane %v283, 6
    %v466 = vrot.slane %v284, 6
    %v467 = vrot.slane %v285, 6
    %v476 = vrot.slane %v323, 4
    %v477 = vrot.slane %v324, 4
    %v478 = vrot.slane %v325, 4
    %v479 = vrot.slane %v326, 4
    %v488 = vrot.slane %v364, 2
    %v489 = vrot.slane %v365, 2
    %v490 = vrot.slane %v366, 2
    %v491 = vrot.slane %v367, 2
    %vm496 = vcmask 1041408
    %v497 = vsel %vm496, %v118, %v413
    %v498 = vsel %vm496, %v119, %v414
    %v499 = vsel %vm496, %v120, %v415
    %v500 = vsel %vm496, %v121, %v416
    %vm501 = vcmask 1043456
    %v502 = vsel %vm501, %v497, %v425
    %v503 = vsel %vm501, %v498, %v426
    %v504 = vsel %vm501, %v499, %v427
    %v505 = vsel %vm501, %v500, %v428
    %vm506 = vcmask 1045504
    %v507 = vsel %vm506, %v502, %v437
    %v508 = vsel %vm506, %v503, %v438
    %v509 = vsel %vm506, %v504, %v439
    %v510 = vsel %vm506, %v505, %v440
    %v511 = vsel %vm496, %v452, %v464
    %v512 = vsel %vm496, %v453, %v465
    %v513 = vsel %vm496, %v454, %v466
    %v514 = vsel %vm496, %v455, %v467
    %v515 = vsel %vm501, %v511, %v476
    %v516 = vsel %vm501, %v512, %v477
    %v517 = vsel %vm501, %v513, %v478
    %v518 = vsel %vm501, %v514, %v479
    %v519 = vsel %vm506, %v515, %v488
    %v520 = vsel %vm506, %v516, %v489
    %v521 = vsel %vm506, %v517, %v490
    %v522 = vsel %vm506, %v518, %v491
    %v523 = vsel %vm496, %v405, 1.0
    %v524 = vsel %vm496, %v406, 1.0
    %v525 = vsel %vm496, %v407, 1.0
    %v526 = vsel %vm496, %v408, 1.0
    %v527 = vld [vmem:[#allocation7] sm:$0x3]
    %vm528 = vcmask 154624
    %v530 = vsel %vm528, %v527, 0
    %vm532 = vcmask 1042432
    %v534 = vsel %vm532, %v523, 0
    %v537 = vsel %vm532, %v524, 0
    %v540 = vsel %vm532, %v525, 0
    %v543 = vsel %vm532, %v526, 0
    %545 = vmatpush.msra.mxu0 0.0
    %546 = vmatpush.msra.mxu0 0.0
    %547 = vmatpush.msra.mxu0 0.0
    %548 = vmatpush.msra.mxu0 0.0
    %549 = vmatpush.msra.mxu0 0.0
    %550 = vmatpush.msra.mxu0 0.0
    %551 = vmatpush.msra.mxu0 0.0
    %552 = vmatpush.msra.mxu0 0.0
    %553 = vmatpush.msra.mxu0 0.0
    %554 = vmatpush.msra.mxu0 0.0
    %555 = vmatpush.msra.mxu0 0.0
    %556 = vmatpush.msra.mxu0 0.0
    %557 = vmatpush.msra.mxu0 0.0
    %558 = vmatpush.msra.mxu0 %v534
    %559 = vmatpush.msra.mxu0 %v519
    %560 = vmatpush.msra.mxu0 %v507
    %561 = vmatmul.f32.gmra.mxu0 %v530
    %v562 = vpop.f32.mrf.mxu0
    %v563 = vadd.f32 0.0, %v562
    %564 = vdwg.mxu0
    %565 = vmatpush.msra.mxu0 0.0
    %566 = vmatpush.msra.mxu0 0.0
    %567 = vmatpush.msra.mxu0 0.0
    %568 = vmatpush.msra.mxu0 0.0
    %569 = vmatpush.msra.mxu0 0.0
    %570 = vmatpush.msra.mxu0 0.0
    %571 = vmatpush.msra.mxu0 0.0
    %572 = vmatpush.msra.mxu0 0.0
    %573 = vmatpush.msra.mxu0 0.0
    %574 = vmatpush.msra.mxu0 0.0
    %575 = vmatpush.msra.mxu0 0.0
    %576 = vmatpush.msra.mxu0 0.0
    %577 = vmatpush.msra.mxu0 0.0
    %578 = vmatpush.msra.mxu0 %v537
    %579 = vmatpush.msra.mxu0 %v520
    %580 = vmatpush.msra.mxu0 %v508
    %581 = vmatmul.f32.gmra.mxu0 %v530
    %v582 = vpop.f32.mrf.mxu0
    %v583 = vadd.f32 0.0, %v582
    %584 = vdwg.mxu0
    %585 = vmatpush.msra.mxu0 0.0
    %586 = vmatpush.msra.mxu0 0.0
    %587 = vmatpush.msra.mxu0 0.0
    %588 = vmatpush.msra.mxu0 0.0
    %589 = vmatpush.msra.mxu0 0.0
    %590 = vmatpush.msra.mxu0 0.0
    %591 = vmatpush.msra.mxu0 0.0
    %592 = vmatpush.msra.mxu0 0.0
    %593 = vmatpush.msra.mxu0 0.0
    %594 = vmatpush.msra.mxu0 0.0
    %595 = vmatpush.msra.mxu0 0.0
    %596 = vmatpush.msra.mxu0 0.0
    %597 = vmatpush.msra.mxu0 0.0
    %598 = vmatpush.msra.mxu0 %v540
    %599 = vmatpush.msra.mxu0 %v521
    %600 = vmatpush.msra.mxu0 %v509
    %601 = vmatmul.f32.gmra.mxu0 %v530
    %v602 = vpop.f32.mrf.mxu0
    %v603 = vadd.f32 0.0, %v602
    %604 = vdwg.mxu0
    %605 = vmatpush.msra.mxu0 0.0
    %606 = vmatpush.msra.mxu0 0.0
    %607 = vmatpush.msra.mxu0 0.0
    %608 = vmatpush.msra.mxu0 0.0
    %609 = vmatpush.msra.mxu0 0.0
    %610 = vmatpush.msra.mxu0 0.0
    %611 = vmatpush.msra.mxu0 0.0
    %612 = vmatpush.msra.mxu0 0.0
    %613 = vmatpush.msra.mxu0 0.0
    %614 = vmatpush.msra.mxu0 0.0
    %615 = vmatpush.msra.mxu0 0.0
    %616 = vmatpush.msra.mxu0 0.0
    %617 = vmatpush.msra.mxu0 0.0
    %618 = vmatpush.msra.mxu0 %v543
    %619 = vmatpush.msra.mxu0 %v522
    %620 = vmatpush.msra.mxu0 %v510
    %621 = vmatmul.f32.gmra.mxu0 %v530
    %v622 = vpop.f32.mrf.mxu0
    %v623 = vadd.f32 0.0, %v622
    %624 = vdwg.mxu0
    %v625 = vmul.f32 %v563, 0.1
    %v626 = vmul.f32 %v583, 0.1
    %v627 = vmul.f32 %v603, 0.1
    %v628 = vmul.f32 %v623, 0.1
    %v629 = vmax.f32 %v563, %v625
    %v630 = vmax.f32 %v583, %v626
    %v631 = vmax.f32 %v603, %v627
    %v632 = vmax.f32 %v623, %v628
    %633 = vrot.lane.b32.xlu0 %v629, 17
    %v634 = vpop.permute.xlu0 %633
    %635 = vrot.lane.b32.xlu0 %v630, 17
    %v636 = vpop.permute.xlu0 %635
    %637 = vrot.lane.b32.xlu0 %v631, 17
    %v638 = vpop.permute.xlu0 %637
    %639 = vrot.lane.b32.xlu0 %v632, 17
    %v640 = vpop.permute.xlu0 %639
    %v641 = vsel %vm104, %v638, %v640
    %v642 = vsel %vm104, %v636, %v638
    %v643 = vsel %vm104, %v634, %v636
    %v644 = vsel %vm104, %v640, %v634
    %v645 = vmul.f32 %v644, %v110
    %v646 = vmul.f32 %v643, %v111
    %v647 = vmul.f32 %v642, %v112
    %v648 = vmul.f32 %v641, %v113
    %649 = vrot.lane.b32.xlu0 %v629, 16
    %v650 = vpop.permute.xlu0 %649
    %651 = vrot.lane.b32.xlu0 %v630, 16
    %v652 = vpop.permute.xlu0 %651
    %653 = vrot.lane.b32.xlu0 %v631, 16
    %v654 = vpop.permute.xlu0 %653
    %655 = vrot.lane.b32.xlu0 %v632, 16
    %v656 = vpop.permute.xlu0 %655
    %v657 = vsel %vm145, %v654, %v656
    %v658 = vsel %vm145, %v652, %v654
    %v659 = vsel %vm145, %v650, %v652
    %v660 = vsel %vm145, %v656, %v650
    %v661 = vmul.f32 %v660, %v151
    %v662 = vmul.f32 %v659, %v152
    %v663 = vmul.f32 %v658, %v153
    %v664 = vmul.f32 %v657, %v154
    %665 = vrot.lane.b32.xlu0 %v629, 15
    %v666 = vpop.permute.xlu0 %665
    %667 = vrot.lane.b32.xlu0 %v630, 15
    %v668 = vpop.permute.xlu0 %667
    %669 = vrot.lane.b32.xlu0 %v631, 15
    %v670 = vpop.permute.xlu0 %669
    %671 = vrot.lane.b32.xlu0 %v632, 15
    %v672 = vpop.permute.xlu0 %671
    %v673 = vsel %vm186, %v670, %v672
    %v674 = vsel %vm186, %v668, %v670
    %v675 = vsel %vm186, %v666, %v668
    %v676 = vsel %vm186, %v672, %v666
    %v677 = vmul.f32 %v676, %v192
    %v678 = vmul.f32 %v675, %v193
    %v679 = vmul.f32 %v674, %v194
    %v680 = vmul.f32 %v673, %v195
    %681 = vrot.lane.b32.xlu0 %v629, 1
    %v682 = vpop.permute.xlu0 %681
    %683 = vrot.lane.b32.xlu0 %v630, 1
    %v684 = vpop.permute.xlu0 %683
    %685 = vrot.lane.b32.xlu0 %v631, 1
    %v686 = vpop.permute.xlu0 %685
    %687 = vrot.lane.b32.xlu0 %v632, 1
    %v688 = vpop.permute.xlu0 %687
    %v689 = vsel %vm227, %v686, %v688
    %v690 = vsel %vm227, %v684, %v686
    %v691 = vsel %vm227, %v682, %v684
    %v692 = vsel %vm227, %v688, %v682
    %v693 = vmul.f32 %v692, %v233
    %v694 = vmul.f32 %v691, %v234
    %v695 = vmul.f32 %v690, %v235
    %v696 = vmul.f32 %v689, %v236
    %697 = vrot.lane.b32.xlu0 %v629, 127
    %v698 = vpop.permute.xlu0 %697
    %699 = vrot.lane.b32.xlu0 %v630, 127
    %v700 = vpop.permute.xlu0 %699
    %701 = vrot.lane.b32.xlu0 %v631, 127
    %v702 = vpop.permute.xlu0 %701
    %703 = vrot.lane.b32.xlu0 %v632, 127
    %v704 = vpop.permute.xlu0 %703
    %v705 = vsel %vm268, %v702, %v704
    %v706 = vsel %vm268, %v700, %v702
    %v707 = vsel %vm268, %v698, %v700
    %v708 = vsel %vm268, %v704, %v698
    %v709 = vmul.f32 %v707, %v274
    %v710 = vmul.f32 %v706, %v275
    %v711 = vmul.f32 %v705, %v276
    %v712 = vmul.f32 %v708, %v277
    %713 = vrot.lane.b32.xlu0 %v629, 113
    %v714 = vpop.permute.xlu0 %713
    %715 = vrot.lane.b32.xlu0 %v630, 113
    %v716 = vpop.permute.xlu0 %715
    %717 = vrot.lane.b32.xlu0 %v631, 113
    %v718 = vpop.permute.xlu0 %717
    %719 = vrot.lane.b32.xlu0 %v632, 113
    %v720 = vpop.permute.xlu0 %719
    %v721 = vsel %vm309, %v718, %v720
    %v722 = vsel %vm309, %v716, %v718
    %v723 = vsel %vm309, %v714, %v716
    %v724 = vsel %vm309, %v720, %v714
    %v725 = vmul.f32 %v723, %v315
    %v726 = vmul.f32 %v722, %v316
    %v727 = vmul.f32 %v721, %v317
    %v728 = vmul.f32 %v724, %v318
    %729 = vrot.lane.b32.xlu0 %v629, 112
    %v730 = vpop.permute.xlu0 %729
    %731 = vrot.lane.b32.xlu0 %v630, 112
    %v732 = vpop.permute.xlu0 %731
    %733 = vrot.lane.b32.xlu0 %v631, 112
    %v734 = vpop.permute.xlu0 %733
    %735 = vrot.lane.b32.xlu0 %v632, 112
    %v736 = vpop.permute.xlu0 %735
    %v737 = vsel %vm350, %v734, %v736
    %v738 = vsel %vm350, %v732, %v734
    %v739 = vsel %vm350, %v730, %v732
    %v740 = vsel %vm350, %v736, %v730
    %v741 = vmul.f32 %v739, %v356
    %v742 = vmul.f32 %v738, %v357
    %v743 = vmul.f32 %v737, %v358
    %v744 = vmul.f32 %v740, %v359
    %745 = vrot.lane.b32.xlu0 %v629, 111
    %v746 = vpop.permute.xlu0 %745
    %747 = vrot.lane.b32.xlu0 %v630, 111
    %v748 = vpop.permute.xlu0 %747
    %749 = vrot.lane.b32.xlu0 %v631, 111
    %v750 = vpop.permute.xlu0 %749
    %751 = vrot.lane.b32.xlu0 %v632, 111
    %v752 = vpop.permute.xlu0 %751
    %v753 = vsel %vm391, %v750, %v752
    %v754 = vsel %vm391, %v748, %v750
    %v755 = vsel %vm391, %v746, %v748
    %v756 = vsel %vm391, %v752, %v746
    %v757 = vmul.f32 %v755, %v397
    %v758 = vmul.f32 %v754, %v398
    %v759 = vmul.f32 %v753, %v399
    %v760 = vmul.f32 %v756, %v400
    %v765 = vrot.slane %v661, 6
    %v766 = vrot.slane %v662, 6
    %v767 = vrot.slane %v663, 6
    %v768 = vrot.slane %v664, 6
    %v777 = vrot.slane %v677, 4
    %v778 = vrot.slane %v678, 4
    %v779 = vrot.slane %v679, 4
    %v780 = vrot.slane %v680, 4
    %v789 = vrot.slane %v693, 2
    %v790 = vrot.slane %v694, 2
    %v791 = vrot.slane %v695, 2
    %v792 = vrot.slane %v696, 2
    %v801 = vrot.slane %v709, 6
    %v802 = vrot.slane %v710, 6
    %v803 = vrot.slane %v711, 6
    %v804 = vrot.slane %v712, 6
    %v813 = vrot.slane %v725, 4
    %v814 = vrot.slane %v726, 4
    %v815 = vrot.slane %v727, 4
    %v816 = vrot.slane %v728, 4
    %v825 = vrot.slane %v741, 2
    %v826 = vrot.slane %v742, 2
    %v827 = vrot.slane %v743, 2
    %v828 = vrot.slane %v744, 2
    %v833 = vsel %vm496, %v645, %v765
    %v834 = vsel %vm496, %v646, %v766
    %v835 = vsel %vm496, %v647, %v767
    %v836 = vsel %vm496, %v648, %v768
    %v837 = vsel %vm501, %v833, %v777
    %v838 = vsel %vm501, %v834, %v778
    %v839 = vsel %vm501, %v835, %v779
    %v840 = vsel %vm501, %v836, %v780
    %v841 = vsel %vm506, %v837, %v789
    %v842 = vsel %vm506, %v838, %v790
    %v843 = vsel %vm506, %v839, %v791
    %v844 = vsel %vm506, %v840, %v792
    %v845 = vsel %vm496, %v629, %v801
    %v846 = vsel %vm496, %v630, %v802
    %v847 = vsel %vm496, %v631, %v803
    %v848 = vsel %vm496, %v632, %v804
    %v849 = vsel %vm501, %v845, %v813
    %v850 = vsel %vm501, %v846, %v814
    %v851 = vsel %vm501, %v847, %v815
    %v852 = vsel %vm501, %v848, %v816
    %v853 = vsel %vm506, %v849, %v825
    %v854 = vsel %vm506, %v850, %v826
    %v855 = vsel %vm506, %v851, %v827
    %v856 = vsel %vm506, %v852, %v828
    %v857 = vsel %vm496, %v757, 1.0
    %v858 = vsel %vm496, %v758, 1.0
    %v859 = vsel %vm496, %v759, 1.0
    %v860 = vsel %vm496, %v760, 1.0
    %s861 = scalar_lea.vmem [#allocation7], 2
    %v862 = vld [vmem:[%s861] sm:$0x3]
    %v864 = vsel %vm528, %v862, 0
    %v867 = vsel %vm532, %v857, 0
    %v870 = vsel %vm532, %v858, 0
    %v873 = vsel %vm532, %v859, 0
    %v876 = vsel %vm532, %v860, 0
    %878 = vmatpush.msra.mxu0 0.0
    %879 = vmatpush.msra.mxu0 0.0
    %880 = vmatpush.msra.mxu0 0.0
    %881 = vmatpush.msra.mxu0 0.0
    %882 = vmatpush.msra.mxu0 0.0
    %883 = vmatpush.msra.mxu0 0.0
    %884 = vmatpush.msra.mxu0 0.0
    %885 = vmatpush.msra.mxu0 0.0
    %886 = vmatpush.msra.mxu0 0.0
    %887 = vmatpush.msra.mxu0 0.0
    %888 = vmatpush.msra.mxu0 0.0
    %889 = vmatpush.msra.mxu0 0.0
    %890 = vmatpush.msra.mxu0 0.0
    %891 = vmatpush.msra.mxu0 %v867
    %892 = vmatpush.msra.mxu0 %v853
    %893 = vmatpush.msra.mxu0 %v841
    %894 = vmatmul.f32.gmra.mxu0 %v864
    %v895 = vpop.f32.mrf.mxu0
    %v896 = vadd.f32 0.0, %v895
    %897 = vdwg.mxu0
    %898 = vmatpush.msra.mxu0 0.0
    %899 = vmatpush.msra.mxu0 0.0
    %900 = vmatpush.msra.mxu0 0.0
    %901 = vmatpush.msra.mxu0 0.0
    %902 = vmatpush.msra.mxu0 0.0
    %903 = vmatpush.msra.mxu0 0.0
    %904 = vmatpush.msra.mxu0 0.0
    %905 = vmatpush.msra.mxu0 0.0
    %906 = vmatpush.msra.mxu0 0.0
    %907 = vmatpush.msra.mxu0 0.0
    %908 = vmatpush.msra.mxu0 0.0
    %909 = vmatpush.msra.mxu0 0.0
    %910 = vmatpush.msra.mxu0 0.0
    %911 = vmatpush.msra.mxu0 %v870
    %912 = vmatpush.msra.mxu0 %v854
    %913 = vmatpush.msra.mxu0 %v842
    %914 = vmatmul.f32.gmra.mxu0 %v864
    %v915 = vpop.f32.mrf.mxu0
    %v916 = vadd.f32 0.0, %v915
    %917 = vdwg.mxu0
    %918 = vmatpush.msra.mxu0 0.0
    %919 = vmatpush.msra.mxu0 0.0
    %920 = vmatpush.msra.mxu0 0.0
    %921 = vmatpush.msra.mxu0 0.0
    %922 = vmatpush.msra.mxu0 0.0
    %923 = vmatpush.msra.mxu0 0.0
    %924 = vmatpush.msra.mxu0 0.0
    %925 = vmatpush.msra.mxu0 0.0
    %926 = vmatpush.msra.mxu0 0.0
    %927 = vmatpush.msra.mxu0 0.0
    %928 = vmatpush.msra.mxu0 0.0
    %929 = vmatpush.msra.mxu0 0.0
    %930 = vmatpush.msra.mxu0 0.0
    %931 = vmatpush.msra.mxu0 %v873
    %932 = vmatpush.msra.mxu0 %v855
    %933 = vmatpush.msra.mxu0 %v843
    %934 = vmatmul.f32.gmra.mxu0 %v864
    %v935 = vpop.f32.mrf.mxu0
    %v936 = vadd.f32 0.0, %v935
    %937 = vdwg.mxu0
    %938 = vmatpush.msra.mxu0 0.0
    %939 = vmatpush.msra.mxu0 0.0
    %940 = vmatpush.msra.mxu0 0.0
    %941 = vmatpush.msra.mxu0 0.0
    %942 = vmatpush.msra.mxu0 0.0
    %943 = vmatpush.msra.mxu0 0.0
    %944 = vmatpush.msra.mxu0 0.0
    %945 = vmatpush.msra.mxu0 0.0
    %946 = vmatpush.msra.mxu0 0.0
    %947 = vmatpush.msra.mxu0 0.0
    %948 = vmatpush.msra.mxu0 0.0
    %949 = vmatpush.msra.mxu0 0.0
    %950 = vmatpush.msra.mxu0 0.0
    %951 = vmatpush.msra.mxu0 %v876
    %952 = vmatpush.msra.mxu0 %v856
    %953 = vmatpush.msra.mxu0 %v844
    %954 = vmatmul.f32.gmra.mxu0 %v864
    %v955 = vpop.f32.mrf.mxu0
    %v956 = vadd.f32 0.0, %v955
    %957 = vdwg.mxu0
    %v958 = vmul.f32 %v896, 0.1
    %v959 = vmul.f32 %v916, 0.1
    %v960 = vmul.f32 %v936, 0.1
    %v961 = vmul.f32 %v956, 0.1
    %v962 = vmax.f32 %v896, %v958
    %v963 = vmax.f32 %v916, %v959
    %v964 = vmax.f32 %v936, %v960
    %v965 = vmax.f32 %v956, %v961
    %966 = vrot.lane.b32.xlu0 %v962, 17
    %v967 = vpop.permute.xlu0 %966
    %968 = vrot.lane.b32.xlu0 %v963, 17
    %v969 = vpop.permute.xlu0 %968
    %970 = vrot.lane.b32.xlu0 %v964, 17
    %v971 = vpop.permute.xlu0 %970
    %972 = vrot.lane.b32.xlu0 %v965, 17
    %v973 = vpop.permute.xlu0 %972
    %v974 = vsel %vm104, %v971, %v973
    %v975 = vsel %vm104, %v969, %v971
    %v976 = vsel %vm104, %v967, %v969
    %v977 = vsel %vm104, %v973, %v967
    %v978 = vmul.f32 %v977, %v110
    %v979 = vmul.f32 %v976, %v111
    %v980 = vmul.f32 %v975, %v112
    %v981 = vmul.f32 %v974, %v113
    %982 = vrot.lane.b32.xlu0 %v962, 16
    %v983 = vpop.permute.xlu0 %982
    %984 = vrot.lane.b32.xlu0 %v963, 16
    %v985 = vpop.permute.xlu0 %984
    %986 = vrot.lane.b32.xlu0 %v964, 16
    %v987 = vpop.permute.xlu0 %986
    %988 = vrot.lane.b32.xlu0 %v965, 16
    %v989 = vpop.permute.xlu0 %988
    %v990 = vsel %vm145, %v987, %v989
    %v991 = vsel %vm145, %v985, %v987
    %v992 = vsel %vm145, %v983, %v985
    %v993 = vsel %vm145, %v989, %v983
    %v994 = vmul.f32 %v993, %v151
    %v995 = vmul.f32 %v992, %v152
    %v996 = vmul.f32 %v991, %v153
    %v997 = vmul.f32 %v990, %v154
    %998 = vrot.lane.b32.xlu0 %v962, 15
    %v999 = vpop.permute.xlu0 %998
    %1000 = vrot.lane.b32.xlu0 %v963, 15
    %v1001 = vpop.permute.xlu0 %1000
    %1002 = vrot.lane.b32.xlu0 %v964, 15
    %v1003 = vpop.permute.xlu0 %1002
    %1004 = vrot.lane.b32.xlu0 %v965, 15
    %v1005 = vpop.permute.xlu0 %1004
    %v1006 = vsel %vm186, %v1003, %v1005
    %v1007 = vsel %vm186, %v1001, %v1003
    %v1008 = vsel %vm186, %v999, %v1001
    %v1009 = vsel %vm186, %v1005, %v999
    %v1010 = vmul.f32 %v1009, %v192
    %v1011 = vmul.f32 %v1008, %v193
    %v1012 = vmul.f32 %v1007, %v194
    %v1013 = vmul.f32 %v1006, %v195
    %1014 = vrot.lane.b32.xlu0 %v962, 1
    %v1015 = vpop.permute.xlu0 %1014
    %1016 = vrot.lane.b32.xlu0 %v963, 1
    %v1017 = vpop.permute.xlu0 %1016
    %1018 = vrot.lane.b32.xlu0 %v964, 1
    %v1019 = vpop.permute.xlu0 %1018
    %1020 = vrot.lane.b32.xlu0 %v965, 1
    %v1021 = vpop.permute.xlu0 %1020
    %v1022 = vsel %vm227, %v1019, %v1021
    %v1023 = vsel %vm227, %v1017, %v1019
    %v1024 = vsel %vm227, %v1015, %v1017
    %v1025 = vsel %vm227, %v1021, %v1015
    %v1026 = vmul.f32 %v1025, %v233
    %v1027 = vmul.f32 %v1024, %v234
    %v1028 = vmul.f32 %v1023, %v235
    %v1029 = vmul.f32 %v1022, %v236
    %1030 = vrot.lane.b32.xlu0 %v962, 127
    %v1031 = vpop.permute.xlu0 %1030
    %1032 = vrot.lane.b32.xlu0 %v963, 127
    %v1033 = vpop.permute.xlu0 %1032
    %1034 = vrot.lane.b32.xlu0 %v964, 127
    %v1035 = vpop.permute.xlu0 %1034
    %1036 = vrot.lane.b32.xlu0 %v965, 127
    %v1037 = vpop.permute.xlu0 %1036
    %v1038 = vsel %vm268, %v1035, %v1037
    %v1039 = vsel %vm268, %v1033, %v1035
    %v1040 = vsel %vm268, %v1031, %v1033
    %v1041 = vsel %vm268, %v1037, %v1031
    %v1042 = vmul.f32 %v1040, %v274
    %v1043 = vmul.f32 %v1039, %v275
    %v1044 = vmul.f32 %v1038, %v276
    %v1045 = vmul.f32 %v1041, %v277
    %1046 = vrot.lane.b32.xlu0 %v962, 113
    %v1047 = vpop.permute.xlu0 %1046
    %1048 = vrot.lane.b32.xlu0 %v963, 113
    %v1049 = vpop.permute.xlu0 %1048
    %1050 = vrot.lane.b32.xlu0 %v964, 113
    %v1051 = vpop.permute.xlu0 %1050
    %1052 = vrot.lane.b32.xlu0 %v965, 113
    %v1053 = vpop.permute.xlu0 %1052
    %v1054 = vsel %vm309, %v1051, %v1053
    %v1055 = vsel %vm309, %v1049, %v1051
    %v1056 = vsel %vm309, %v1047, %v1049
    %v1057 = vsel %vm309, %v1053, %v1047
    %v1058 = vmul.f32 %v1056, %v315
    %v1059 = vmul.f32 %v1055, %v316
    %v1060 = vmul.f32 %v1054, %v317
    %v1061 = vmul.f32 %v1057, %v318
    %1062 = vrot.lane.b32.xlu0 %v962, 112
    %v1063 = vpop.permute.xlu0 %1062
    %1064 = vrot.lane.b32.xlu0 %v963, 112
    %v1065 = vpop.permute.xlu0 %1064
    %1066 = vrot.lane.b32.xlu0 %v964, 112
    %v1067 = vpop.permute.xlu0 %1066
    %1068 = vrot.lane.b32.xlu0 %v965, 112
    %v1069 = vpop.permute.xlu0 %1068
    %v1070 = vsel %vm350, %v1067, %v1069
    %v1071 = vsel %vm350, %v1065, %v1067
    %v1072 = vsel %vm350, %v1063, %v1065
    %v1073 = vsel %vm350, %v1069, %v1063
    %v1074 = vmul.f32 %v1072, %v356
    %v1075 = vmul.f32 %v1071, %v357
    %v1076 = vmul.f32 %v1070, %v358
    %v1077 = vmul.f32 %v1073, %v359
    %1078 = vrot.lane.b32.xlu0 %v962, 111
    %v1079 = vpop.permute.xlu0 %1078
    %1080 = vrot.lane.b32.xlu0 %v963, 111
    %v1081 = vpop.permute.xlu0 %1080
    %1082 = vrot.lane.b32.xlu0 %v964, 111
    %v1083 = vpop.permute.xlu0 %1082
    %1084 = vrot.lane.b32.xlu0 %v965, 111
    %v1085 = vpop.permute.xlu0 %1084
    %v1086 = vsel %vm391, %v1083, %v1085
    %v1087 = vsel %vm391, %v1081, %v1083
    %v1088 = vsel %vm391, %v1079, %v1081
    %v1089 = vsel %vm391, %v1085, %v1079
    %v1090 = vmul.f32 %v1088, %v397
    %v1091 = vmul.f32 %v1087, %v398
    %v1092 = vmul.f32 %v1086, %v399
    %v1093 = vmul.f32 %v1089, %v400
    %v1098 = vrot.slane %v994, 6
    %v1099 = vrot.slane %v995, 6
    %v1100 = vrot.slane %v996, 6
    %v1101 = vrot.slane %v997, 6
    %v1110 = vrot.slane %v1010, 4
    %v1111 = vrot.slane %v1011, 4
    %v1112 = vrot.slane %v1012, 4
    %v1113 = vrot.slane %v1013, 4
    %v1122 = vrot.slane %v1026, 2
    %v1123 = vrot.slane %v1027, 2
    %v1124 = vrot.slane %v1028, 2
    %v1125 = vrot.slane %v1029, 2
    %v1134 = vrot.slane %v1042, 6
    %v1135 = vrot.slane %v1043, 6
    %v1136 = vrot.slane %v1044, 6
    %v1137 = vrot.slane %v1045, 6
    %v1146 = vrot.slane %v1058, 4
    %v1147 = vrot.slane %v1059, 4
    %v1148 = vrot.slane %v1060, 4
    %v1149 = vrot.slane %v1061, 4
    %v1158 = vrot.slane %v1074, 2
    %v1159 = vrot.slane %v1075, 2
    %v1160 = vrot.slane %v1076, 2
    %v1161 = vrot.slane %v1077, 2
    %v1166 = vsel %vm496, %v978, %v1098
    %v1167 = vsel %vm496, %v979, %v1099
    %v1168 = vsel %vm496, %v980, %v1100
    %v1169 = vsel %vm496, %v981, %v1101
    %v1170 = vsel %vm501, %v1166, %v1110
    %v1171 = vsel %vm501, %v1167, %v1111
    %v1172 = vsel %vm501, %v1168, %v1112
    %v1173 = vsel %vm501, %v1169, %v1113
    %v1174 = vsel %vm506, %v1170, %v1122
    %v1175 = vsel %vm506, %v1171, %v1123
    %v1176 = vsel %vm506, %v1172, %v1124
    %v1177 = vsel %vm506, %v1173, %v1125
    %v1178 = vsel %vm496, %v962, %v1134
    %v1179 = vsel %vm496, %v963, %v1135
    %v1180 = vsel %vm496, %v964, %v1136
    %v1181 = vsel %vm496, %v965, %v1137
    %v1182 = vsel %vm501, %v1178, %v1146
    %v1183 = vsel %vm501, %v1179, %v1147
    %v1184 = vsel %vm501, %v1180, %v1148
    %v1185 = vsel %vm501, %v1181, %v1149
    %v1186 = vsel %vm506, %v1182, %v1158
    %v1187 = vsel %vm506, %v1183, %v1159
    %v1188 = vsel %vm506, %v1184, %v1160
    %v1189 = vsel %vm506, %v1185, %v1161
    %v1190 = vsel %vm496, %v1090, 1.0
    %v1191 = vsel %vm496, %v1091, 1.0
    %v1192 = vsel %vm496, %v1092, 1.0
    %v1193 = vsel %vm496, %v1093, 1.0
    %s1194 = scalar_lea.vmem [#allocation7], 4
    %v1195 = vld [vmem:[%s1194] sm:$0x3]
    %v1197 = vsel %vm528, %v1195, 0
    %v1200 = vsel %vm532, %v1190, 0
    %v1203 = vsel %vm532, %v1191, 0
    %v1206 = vsel %vm532, %v1192, 0
    %v1209 = vsel %vm532, %v1193, 0
    %1211 = vmatpush.msra.mxu0 0.0
    %1212 = vmatpush.msra.mxu0 0.0
    %1213 = vmatpush.msra.mxu0 0.0
    %1214 = vmatpush.msra.mxu0 0.0
    %1215 = vmatpush.msra.mxu0 0.0
    %1216 = vmatpush.msra.mxu0 0.0
    %1217 = vmatpush.msra.mxu0 0.0
    %1218 = vmatpush.msra.mxu0 0.0
    %1219 = vmatpush.msra.mxu0 0.0
    %1220 = vmatpush.msra.mxu0 0.0
    %1221 = vmatpush.msra.mxu0 0.0
    %1222 = vmatpush.msra.mxu0 0.0
    %1223 = vmatpush.msra.mxu0 0.0
    %1224 = vmatpush.msra.mxu0 %v1200
    %1225 = vmatpush.msra.mxu0 %v1186
    %1226 = vmatpush.msra.mxu0 %v1174
    %1227 = vmatmul.f32.gmra.mxu0 %v1197
    %v1228 = vpop.f32.mrf.mxu0
    %v1229 = vadd.f32 0.0, %v1228
    %1230 = vdwg.mxu0
    %1231 = vmatpush.msra.mxu0 0.0
    %1232 = vmatpush.msra.mxu0 0.0
    %1233 = vmatpush.msra.mxu0 0.0
    %1234 = vmatpush.msra.mxu0 0.0
    %1235 = vmatpush.msra.mxu0 0.0
    %1236 = vmatpush.msra.mxu0 0.0
    %1237 = vmatpush.msra.mxu0 0.0
    %1238 = vmatpush.msra.mxu0 0.0
    %1239 = vmatpush.msra.mxu0 0.0
    %1240 = vmatpush.msra.mxu0 0.0
    %1241 = vmatpush.msra.mxu0 0.0
    %1242 = vmatpush.msra.mxu0 0.0
    %1243 = vmatpush.msra.mxu0 0.0
    %1244 = vmatpush.msra.mxu0 %v1203
    %1245 = vmatpush.msra.mxu0 %v1187
    %1246 = vmatpush.msra.mxu0 %v1175
    %1247 = vmatmul.f32.gmra.mxu0 %v1197
    %v1248 = vpop.f32.mrf.mxu0
    %v1249 = vadd.f32 0.0, %v1248
    %1250 = vdwg.mxu0
    %1251 = vmatpush.msra.mxu0 0.0
    %1252 = vmatpush.msra.mxu0 0.0
    %1253 = vmatpush.msra.mxu0 0.0
    %1254 = vmatpush.msra.mxu0 0.0
    %1255 = vmatpush.msra.mxu0 0.0
    %1256 = vmatpush.msra.mxu0 0.0
    %1257 = vmatpush.msra.mxu0 0.0
    %1258 = vmatpush.msra.mxu0 0.0
    %1259 = vmatpush.msra.mxu0 0.0
    %1260 = vmatpush.msra.mxu0 0.0
    %1261 = vmatpush.msra.mxu0 0.0
    %1262 = vmatpush.msra.mxu0 0.0
    %1263 = vmatpush.msra.mxu0 0.0
    %1264 = vmatpush.msra.mxu0 %v1206
    %1265 = vmatpush.msra.mxu0 %v1188
    %1266 = vmatpush.msra.mxu0 %v1176
    %1267 = vmatmul.f32.gmra.mxu0 %v1197
    %v1268 = vpop.f32.mrf.mxu0
    %v1269 = vadd.f32 0.0, %v1268
    %1270 = vdwg.mxu0
    %1271 = vmatpush.msra.mxu0 0.0
    %1272 = vmatpush.msra.mxu0 0.0
    %1273 = vmatpush.msra.mxu0 0.0
    %1274 = vmatpush.msra.mxu0 0.0
    %1275 = vmatpush.msra.mxu0 0.0
    %1276 = vmatpush.msra.mxu0 0.0
    %1277 = vmatpush.msra.mxu0 0.0
    %1278 = vmatpush.msra.mxu0 0.0
    %1279 = vmatpush.msra.mxu0 0.0
    %1280 = vmatpush.msra.mxu0 0.0
    %1281 = vmatpush.msra.mxu0 0.0
    %1282 = vmatpush.msra.mxu0 0.0
    %1283 = vmatpush.msra.mxu0 0.0
    %1284 = vmatpush.msra.mxu0 %v1209
    %1285 = vmatpush.msra.mxu0 %v1189
    %1286 = vmatpush.msra.mxu0 %v1177
    %1287 = vmatmul.f32.gmra.mxu0 %v1197
    %v1288 = vpop.f32.mrf.mxu0
    %v1289 = vadd.f32 0.0, %v1288
    %1290 = vdwg.mxu0
    %v1295 = vrot.slane %v1249, 4
    %v1296 = vrot.slane %v1289, 4
    %v1297 = vsel %vm501, %v1229, %v1295
    %v1298 = vsel %vm501, %v1269, %v1296
    %v1301 = vadd.f32 %v60, %v1297
    %v1302 = vadd.f32 %v61, %v1298
    %1305 = vst [vmem:[#allocation1] ss:$2 sm:$0xff] %v1301
    %s1306 = scalar_lea.vmem [#allocation1], 16
    %1307 = vst [vmem:[%s1306] ss:$2 sm:$0xff] %v1302
    %v1308 = vld.sshfl [vmem:[#allocation1] sm:$0xff pattern:$0x75316420]
    %v1309 = vld.sshfl [vmem:[#allocation1 + $0x8] sm:$0xff pattern:$0x75316420]
    %v1310 = vld.sshfl [vmem:[#allocation1 + $0x10] sm:$0xff pattern:$0x75316420]
    %v1311 = vld.sshfl [vmem:[#allocation1 + $0x18] sm:$0xff pattern:$0x75316420]
    %1316 = vrot.lane.b32.xlu0 %v1308, 17
    %v1317 = vpop.permute.xlu0 %1316
    %1318 = vrot.lane.b32.xlu0 %v1309, 17
    %v1319 = vpop.permute.xlu0 %1318
    %1320 = vrot.lane.b32.xlu0 %v1310, 17
    %v1321 = vpop.permute.xlu0 %1320
    %1322 = vrot.lane.b32.xlu0 %v1311, 17
    %v1323 = vpop.permute.xlu0 %1322
    %v1324 = vsel %vm104, %v1321, %v1323
    %v1325 = vsel %vm104, %v1319, %v1321
    %v1326 = vsel %vm104, %v1317, %v1319
    %v1327 = vsel %vm104, %v1323, %v1317
    %v1328 = vmul.f32 %v1327, %v110
    %v1329 = vmul.f32 %v1326, %v111
    %v1330 = vmul.f32 %v1325, %v112
    %v1331 = vmul.f32 %v1324, %v113
    %1332 = vst [vmem:[#allocation1] ss:$2 sm:$0xff] %v1301
    %s1333 = scalar_lea.vmem [#allocation1], 16
    %1334 = vst [vmem:[%s1333] ss:$2 sm:$0xff] %v1302
    %v1335 = vld.sshfl [vmem:[#allocation1] sm:$0xff pattern:$0x75316420]
    %v1336 = vld.sshfl [vmem:[#allocation1 + $0x8] sm:$0xff pattern:$0x75316420]
    %v1337 = vld.sshfl [vmem:[#allocation1 + $0x10] sm:$0xff pattern:$0x75316420]
    %v1338 = vld.sshfl [vmem:[#allocation1 + $0x18] sm:$0xff pattern:$0x75316420]
    %1343 = vrot.lane.b32.xlu0 %v1335, 16
    %v1344 = vpop.permute.xlu0 %1343
    %1345 = vrot.lane.b32.xlu0 %v1336, 16
    %v1346 = vpop.permute.xlu0 %1345
    %1347 = vrot.lane.b32.xlu0 %v1337, 16
    %v1348 = vpop.permute.xlu0 %1347
    %1349 = vrot.lane.b32.xlu0 %v1338, 16
    %v1350 = vpop.permute.xlu0 %1349
    %v1351 = vsel %vm145, %v1348, %v1350
    %v1352 = vsel %vm145, %v1346, %v1348
    %v1353 = vsel %vm145, %v1344, %v1346
    %v1354 = vsel %vm145, %v1350, %v1344
    %v1355 = vmul.f32 %v1354, %v151
    %v1356 = vmul.f32 %v1353, %v152
    %v1357 = vmul.f32 %v1352, %v153
    %v1358 = vmul.f32 %v1351, %v154
    %1359 = vst [vmem:[#allocation1] ss:$2 sm:$0xff] %v1301
    %s1360 = scalar_lea.vmem [#allocation1], 16
    %1361 = vst [vmem:[%s1360] ss:$2 sm:$0xff] %v1302
    %v1362 = vld.sshfl [vmem:[#allocation1] sm:$0xff pattern:$0x75316420]
    %v1363 = vld.sshfl [vmem:[#allocation1 + $0x8] sm:$0xff pattern:$0x75316420]
    %v1364 = vld.sshfl [vmem:[#allocation1 + $0x10] sm:$0xff pattern:$0x75316420]
    %v1365 = vld.sshfl [vmem:[#allocation1 + $0x18] sm:$0xff pattern:$0x75316420]
    %1370 = vrot.lane.b32.xlu0 %v1362, 15
    %v1371 = vpop.permute.xlu0 %1370
    %1372 = vrot.lane.b32.xlu0 %v1363, 15
    %v1373 = vpop.permute.xlu0 %1372
    %1374 = vrot.lane.b32.xlu0 %v1364, 15
    %v1375 = vpop.permute.xlu0 %1374
    %1376 = vrot.lane.b32.xlu0 %v1365, 15
    %v1377 = vpop.permute.xlu0 %1376
    %v1378 = vsel %vm186, %v1375, %v1377
    %v1379 = vsel %vm186, %v1373, %v1375
    %v1380 = vsel %vm186, %v1371, %v1373
    %v1381 = vsel %vm186, %v1377, %v1371
    %v1382 = vmul.f32 %v1381, %v192
    %v1383 = vmul.f32 %v1380, %v193
    %v1384 = vmul.f32 %v1379, %v194
    %v1385 = vmul.f32 %v1378, %v195
    %1386 = vst [vmem:[#allocation1] ss:$2 sm:$0xff] %v1301
    %s1387 = scalar_lea.vmem [#allocation1], 16
    %1388 = vst [vmem:[%s1387] ss:$2 sm:$0xff] %v1302
    %v1389 = vld.sshfl [vmem:[#allocation1] sm:$0xff pattern:$0x75316420]
    %v1390 = vld.sshfl [vmem:[#allocation1 + $0x8] sm:$0xff pattern:$0x75316420]
    %v1391 = vld.sshfl [vmem:[#allocation1 + $0x10] sm:$0xff pattern:$0x75316420]
    %v1392 = vld.sshfl [vmem:[#allocation1 + $0x18] sm:$0xff pattern:$0x75316420]
    %1397 = vrot.lane.b32.xlu0 %v1389, 1
    %v1398 = vpop.permute.xlu0 %1397
    %1399 = vrot.lane.b32.xlu0 %v1390, 1
    %v1400 = vpop.permute.xlu0 %1399
    %1401 = vrot.lane.b32.xlu0 %v1391, 1
    %v1402 = vpop.permute.xlu0 %1401
    %1403 = vrot.lane.b32.xlu0 %v1392, 1
    %v1404 = vpop.permute.xlu0 %1403
    %v1405 = vsel %vm227, %v1402, %v1404
    %v1406 = vsel %vm227, %v1400, %v1402
    %v1407 = vsel %vm227, %v1398, %v1400
    %v1408 = vsel %vm227, %v1404, %v1398
    %v1409 = vmul.f32 %v1408, %v233
    %v1410 = vmul.f32 %v1407, %v234
    %v1411 = vmul.f32 %v1406, %v235
    %v1412 = vmul.f32 %v1405, %v236
    %1413 = vst [vmem:[#allocation1] ss:$2 sm:$0xff] %v1301
    %s1414 = scalar_lea.vmem [#allocation1], 16
    %1415 = vst [vmem:[%s1414] ss:$2 sm:$0xff] %v1302
    %v1416 = vld.sshfl [vmem:[#allocation1] sm:$0xff pattern:$0x75316420]
    %v1417 = vld.sshfl [vmem:[#allocation1 + $0x8] sm:$0xff pattern:$0x75316420]
    %v1418 = vld.sshfl [vmem:[#allocation1 + $0x10] sm:$0xff pattern:$0x75316420]
    %v1419 = vld.sshfl [vmem:[#allocation1 + $0x18] sm:$0xff pattern:$0x75316420]
    %1424 = vrot.lane.b32.xlu0 %v1416, 127
    %v1425 = vpop.permute.xlu0 %1424
    %1426 = vrot.lane.b32.xlu0 %v1417, 127
    %v1427 = vpop.permute.xlu0 %1426
    %1428 = vrot.lane.b32.xlu0 %v1418, 127
    %v1429 = vpop.permute.xlu0 %1428
    %1430 = vrot.lane.b32.xlu0 %v1419, 127
    %v1431 = vpop.permute.xlu0 %1430
    %v1432 = vsel %vm268, %v1429, %v1431
    %v1433 = vsel %vm268, %v1427, %v1429
    %v1434 = vsel %vm268, %v1425, %v1427
    %v1435 = vsel %vm268, %v1431, %v1425
    %v1436 = vmul.f32 %v1434, %v274
    %v1437 = vmul.f32 %v1433, %v275
    %v1438 = vmul.f32 %v1432, %v276
    %v1439 = vmul.f32 %v1435, %v277
    %1440 = vst [vmem:[#allocation1] ss:$2 sm:$0xff] %v1301
    %s1441 = scalar_lea.vmem [#allocation1], 16
    %1442 = vst [vmem:[%s1441] ss:$2 sm:$0xff] %v1302
    %v1443 = vld.sshfl [vmem:[#allocation1] sm:$0xff pattern:$0x75316420]
    %v1444 = vld.sshfl [vmem:[#allocation1 + $0x8] sm:$0xff pattern:$0x75316420]
    %v1445 = vld.sshfl [vmem:[#allocation1 + $0x10] sm:$0xff pattern:$0x75316420]
    %v1446 = vld.sshfl [vmem:[#allocation1 + $0x18] sm:$0xff pattern:$0x75316420]
    %1451 = vrot.lane.b32.xlu0 %v1443, 113
    %v1452 = vpop.permute.xlu0 %1451
    %1453 = vrot.lane.b32.xlu0 %v1444, 113
    %v1454 = vpop.permute.xlu0 %1453
    %1455 = vrot.lane.b32.xlu0 %v1445, 113
    %v1456 = vpop.permute.xlu0 %1455
    %1457 = vrot.lane.b32.xlu0 %v1446, 113
    %v1458 = vpop.permute.xlu0 %1457
    %v1459 = vsel %vm309, %v1456, %v1458
    %v1460 = vsel %vm309, %v1454, %v1456
    %v1461 = vsel %vm309, %v1452, %v1454
    %v1462 = vsel %vm309, %v1458, %v1452
    %v1463 = vmul.f32 %v1461, %v315
    %v1464 = vmul.f32 %v1460, %v316
    %v1465 = vmul.f32 %v1459, %v317
    %v1466 = vmul.f32 %v1462, %v318
    %1467 = vst [vmem:[#allocation1] ss:$2 sm:$0xff] %v1301
    %s1468 = scalar_lea.vmem [#allocation1], 16
    %1469 = vst [vmem:[%s1468] ss:$2 sm:$0xff] %v1302
    %v1470 = vld.sshfl [vmem:[#allocation1] sm:$0xff pattern:$0x75316420]
    %v1471 = vld.sshfl [vmem:[#allocation1 + $0x8] sm:$0xff pattern:$0x75316420]
    %v1472 = vld.sshfl [vmem:[#allocation1 + $0x10] sm:$0xff pattern:$0x75316420]
    %v1473 = vld.sshfl [vmem:[#allocation1 + $0x18] sm:$0xff pattern:$0x75316420]
    %1478 = vrot.lane.b32.xlu0 %v1470, 112
    %v1479 = vpop.permute.xlu0 %1478
    %1480 = vrot.lane.b32.xlu0 %v1471, 112
    %v1481 = vpop.permute.xlu0 %1480
    %1482 = vrot.lane.b32.xlu0 %v1472, 112
    %v1483 = vpop.permute.xlu0 %1482
    %1484 = vrot.lane.b32.xlu0 %v1473, 112
    %v1485 = vpop.permute.xlu0 %1484
    %v1486 = vsel %vm350, %v1483, %v1485
    %v1487 = vsel %vm350, %v1481, %v1483
    %v1488 = vsel %vm350, %v1479, %v1481
    %v1489 = vsel %vm350, %v1485, %v1479
    %v1490 = vmul.f32 %v1488, %v356
    %v1491 = vmul.f32 %v1487, %v357
    %v1492 = vmul.f32 %v1486, %v358
    %v1493 = vmul.f32 %v1489, %v359
    %1494 = vst [vmem:[#allocation1] ss:$2 sm:$0xff] %v1301
    %s1495 = scalar_lea.vmem [#allocation1], 16
    %1496 = vst [vmem:[%s1495] ss:$2 sm:$0xff] %v1302
    %v1497 = vld.sshfl [vmem:[#allocation1] sm:$0xff pattern:$0x75316420]
    %v1498 = vld.sshfl [vmem:[#allocation1 + $0x8] sm:$0xff pattern:$0x75316420]
    %v1499 = vld.sshfl [vmem:[#allocation1 + $0x10] sm:$0xff pattern:$0x75316420]
    %v1500 = vld.sshfl [vmem:[#allocation1 + $0x18] sm:$0xff pattern:$0x75316420]
    %1505 = vrot.lane.b32.xlu0 %v1497, 111
    %v1506 = vpop.permute.xlu0 %1505
    %1507 = vrot.lane.b32.xlu0 %v1498, 111
    %v1508 = vpop.permute.xlu0 %1507
    %1509 = vrot.lane.b32.xlu0 %v1499, 111
    %v1510 = vpop.permute.xlu0 %1509
    %1511 = vrot.lane.b32.xlu0 %v1500, 111
    %v1512 = vpop.permute.xlu0 %1511
    %v1513 = vsel %vm391, %v1510, %v1512
    %v1514 = vsel %vm391, %v1508, %v1510
    %v1515 = vsel %vm391, %v1506, %v1508
    %v1516 = vsel %vm391, %v1512, %v1506
    %v1517 = vmul.f32 %v1515, %v397
    %v1518 = vmul.f32 %v1514, %v398
    %v1519 = vmul.f32 %v1513, %v399
    %v1520 = vmul.f32 %v1516, %v400
    %v1525 = vrot.slane %v1355, 6
    %v1526 = vrot.slane %v1356, 6
    %v1527 = vrot.slane %v1357, 6
    %v1528 = vrot.slane %v1358, 6
    %v1537 = vrot.slane %v1382, 4
    %v1538 = vrot.slane %v1383, 4
    %v1539 = vrot.slane %v1384, 4
    %v1540 = vrot.slane %v1385, 4
    %v1549 = vrot.slane %v1409, 2
    %v1550 = vrot.slane %v1410, 2
    %v1551 = vrot.slane %v1411, 2
    %v1552 = vrot.slane %v1412, 2
    %1557 = vst [vmem:[#allocation1] ss:$2 sm:$0xff] %v1301
    %s1558 = scalar_lea.vmem [#allocation1], 16
    %1559 = vst [vmem:[%s1558] ss:$2 sm:$0xff] %v1302
    %v1560 = vld.sshfl [vmem:[#allocation1] sm:$0xff pattern:$0x75316420]
    %v1561 = vld.sshfl [vmem:[#allocation1 + $0x8] sm:$0xff pattern:$0x75316420]
    %v1562 = vld.sshfl [vmem:[#allocation1 + $0x10] sm:$0xff pattern:$0x75316420]
    %v1563 = vld.sshfl [vmem:[#allocation1 + $0x18] sm:$0xff pattern:$0x75316420]
    %v1572 = vrot.slane %v1436, 6
    %v1573 = vrot.slane %v1437, 6
    %v1574 = vrot.slane %v1438, 6
    %v1575 = vrot.slane %v1439, 6
    %v1584 = vrot.slane %v1463, 4
    %v1585 = vrot.slane %v1464, 4
    %v1586 = vrot.slane %v1465, 4
    %v1587 = vrot.slane %v1466, 4
    %v1596 = vrot.slane %v1490, 2
    %v1597 = vrot.slane %v1491, 2
    %v1598 = vrot.slane %v1492, 2
    %v1599 = vrot.slane %v1493, 2
    %v1604 = vsel %vm496, %v1328, %v1525
    %v1605 = vsel %vm496, %v1329, %v1526
    %v1606 = vsel %vm496, %v1330, %v1527
    %v1607 = vsel %vm496, %v1331, %v1528
    %v1608 = vsel %vm501, %v1604, %v1537
    %v1609 = vsel %vm501, %v1605, %v1538
    %v1610 = vsel %vm501, %v1606, %v1539
    %v1611 = vsel %vm501, %v1607, %v1540
    %v1612 = vsel %vm506, %v1608, %v1549
    %v1613 = vsel %vm506, %v1609, %v1550
    %v1614 = vsel %vm506, %v1610, %v1551
    %v1615 = vsel %vm506, %v1611, %v1552
    %v1616 = vsel %vm496, %v1560, %v1572
    %v1617 = vsel %vm496, %v1561, %v1573
    %v1618 = vsel %vm496, %v1562, %v1574
    %v1619 = vsel %vm496, %v1563, %v1575
    %v1620 = vsel %vm501, %v1616, %v1584
    %v1621 = vsel %vm501, %v1617, %v1585
    %v1622 = vsel %vm501, %v1618, %v1586
    %v1623 = vsel %vm501, %v1619, %v1587
    %v1624 = vsel %vm506, %v1620, %v1596
    %v1625 = vsel %vm506, %v1621, %v1597
    %v1626 = vsel %vm506, %v1622, %v1598
    %v1627 = vsel %vm506, %v1623, %v1599
    %v1628 = vsel %vm496, %v1517, 1.0
    %v1629 = vsel %vm496, %v1518, 1.0
    %v1630 = vsel %vm496, %v1519, 1.0
    %v1631 = vsel %vm496, %v1520, 1.0
    %s1632 = scalar_lea.vmem [#allocation7], 6
    %v1633 = vld [vmem:[%s1632] sm:$0x3]
    %v1635 = vsel %vm528, %v1633, 0
    %v1638 = vsel %vm532, %v1628, 0
    %v1641 = vsel %vm532, %v1629, 0
    %v1644 = vsel %vm532, %v1630, 0
    %v1647 = vsel %vm532, %v1631, 0
    %1649 = vmatpush.msra.mxu0 0.0
    %1650 = vmatpush.msra.mxu0 0.0
    %1651 = vmatpush.msra.mxu0 0.0
    %1652 = vmatpush.msra.mxu0 0.0
    %1653 = vmatpush.msra.mxu0 0.0
    %1654 = vmatpush.msra.mxu0 0.0
    %1655 = vmatpush.msra.mxu0 0.0
    %1656 = vmatpush.msra.mxu0 0.0
    %1657 = vmatpush.msra.mxu0 0.0
    %1658 = vmatpush.msra.mxu0 0.0
    %1659 = vmatpush.msra.mxu0 0.0
    %1660 = vmatpush.msra.mxu0 0.0
    %1661 = vmatpush.msra.mxu0 0.0
    %1662 = vmatpush.msra.mxu0 %v1638
    %1663 = vmatpush.msra.mxu0 %v1624
    %1664 = vmatpush.msra.mxu0 %v1612
    %1665 = vmatmul.f32.gmra.mxu0 %v1635
    %v1666 = vpop.f32.mrf.mxu0
    %v1667 = vadd.f32 0.0, %v1666
    %1668 = vdwg.mxu0
    %1669 = vmatpush.msra.mxu0 0.0
    %1670 = vmatpush.msra.mxu0 0.0
    %1671 = vmatpush.msra.mxu0 0.0
    %1672 = vmatpush.msra.mxu0 0.0
    %1673 = vmatpush.msra.mxu0 0.0
    %1674 = vmatpush.msra.mxu0 0.0
    %1675 = vmatpush.msra.mxu0 0.0
    %1676 = vmatpush.msra.mxu0 0.0
    %1677 = vmatpush.msra.mxu0 0.0
    %1678 = vmatpush.msra.mxu0 0.0
    %1679 = vmatpush.msra.mxu0 0.0
    %1680 = vmatpush.msra.mxu0 0.0
    %1681 = vmatpush.msra.mxu0 0.0
    %1682 = vmatpush.msra.mxu0 %v1641
    %1683 = vmatpush.msra.mxu0 %v1625
    %1684 = vmatpush.msra.mxu0 %v1613
    %1685 = vmatmul.f32.gmra.mxu0 %v1635
    %v1686 = vpop.f32.mrf.mxu0
    %v1687 = vadd.f32 0.0, %v1686
    %1688 = vdwg.mxu0
    %1689 = vmatpush.msra.mxu0 0.0
    %1690 = vmatpush.msra.mxu0 0.0
    %1691 = vmatpush.msra.mxu0 0.0
    %1692 = vmatpush.msra.mxu0 0.0
    %1693 = vmatpush.msra.mxu0 0.0
    %1694 = vmatpush.msra.mxu0 0.0
    %1695 = vmatpush.msra.mxu0 0.0
    %1696 = vmatpush.msra.mxu0 0.0
    %1697 = vmatpush.msra.mxu0 0.0
    %1698 = vmatpush.msra.mxu0 0.0
    %1699 = vmatpush.msra.mxu0 0.0
    %1700 = vmatpush.msra.mxu0 0.0
    %1701 = vmatpush.msra.mxu0 0.0
    %1702 = vmatpush.msra.mxu0 %v1644
    %1703 = vmatpush.msra.mxu0 %v1626
    %1704 = vmatpush.msra.mxu0 %v1614
    %1705 = vmatmul.f32.gmra.mxu0 %v1635
    %v1706 = vpop.f32.mrf.mxu0
    %v1707 = vadd.f32 0.0, %v1706
    %1708 = vdwg.mxu0
    %1709 = vmatpush.msra.mxu0 0.0
    %1710 = vmatpush.msra.mxu0 0.0
    %1711 = vmatpush.msra.mxu0 0.0
    %1712 = vmatpush.msra.mxu0 0.0
    %1713 = vmatpush.msra.mxu0 0.0
    %1714 = vmatpush.msra.mxu0 0.0
    %1715 = vmatpush.msra.mxu0 0.0
    %1716 = vmatpush.msra.mxu0 0.0
    %1717 = vmatpush.msra.mxu0 0.0
    %1718 = vmatpush.msra.mxu0 0.0
    %1719 = vmatpush.msra.mxu0 0.0
    %1720 = vmatpush.msra.mxu0 0.0
    %1721 = vmatpush.msra.mxu0 0.0
    %1722 = vmatpush.msra.mxu0 %v1647
    %1723 = vmatpush.msra.mxu0 %v1627
    %1724 = vmatpush.msra.mxu0 %v1615
    %1725 = vmatmul.f32.gmra.mxu0 %v1635
    %v1726 = vpop.f32.mrf.mxu0
    %v1727 = vadd.f32 0.0, %v1726
    %1728 = vdwg.mxu0
    %v1729 = vmul.f32 %v1667, 0.1
    %v1730 = vmul.f32 %v1687, 0.1
    %v1731 = vmul.f32 %v1707, 0.1
    %v1732 = vmul.f32 %v1727, 0.1
    %v1733 = vmax.f32 %v1667, %v1729
    %v1734 = vmax.f32 %v1687, %v1730
    %v1735 = vmax.f32 %v1707, %v1731
    %v1736 = vmax.f32 %v1727, %v1732
    %1737 = vrot.lane.b32.xlu0 %v1733, 17
    %v1738 = vpop.permute.xlu0 %1737
    %1739 = vrot.lane.b32.xlu0 %v1734, 17
    %v1740 = vpop.permute.xlu0 %1739
    %1741 = vrot.lane.b32.xlu0 %v1735, 17
    %v1742 = vpop.permute.xlu0 %1741
    %1743 = vrot.lane.b32.xlu0 %v1736, 17
    %v1744 = vpop.permute.xlu0 %1743
    %v1745 = vsel %vm104, %v1742, %v1744
    %v1746 = vsel %vm104, %v1740, %v1742
    %v1747 = vsel %vm104, %v1738, %v1740
    %v1748 = vsel %vm104, %v1744, %v1738
    %v1749 = vmul.f32 %v1748, %v110
    %v1750 = vmul.f32 %v1747, %v111
    %v1751 = vmul.f32 %v1746, %v112
    %v1752 = vmul.f32 %v1745, %v113
    %1753 = vrot.lane.b32.xlu0 %v1733, 16
    %v1754 = vpop.permute.xlu0 %1753
    %1755 = vrot.lane.b32.xlu0 %v1734, 16
    %v1756 = vpop.permute.xlu0 %1755
    %1757 = vrot.lane.b32.xlu0 %v1735, 16
    %v1758 = vpop.permute.xlu0 %1757
    %1759 = vrot.lane.b32.xlu0 %v1736, 16
    %v1760 = vpop.permute.xlu0 %1759
    %v1761 = vsel %vm145, %v1758, %v1760
    %v1762 = vsel %vm145, %v1756, %v1758
    %v1763 = vsel %vm145, %v1754, %v1756
    %v1764 = vsel %vm145, %v1760, %v1754
    %v1765 = vmul.f32 %v1764, %v151
    %v1766 = vmul.f32 %v1763, %v152
    %v1767 = vmul.f32 %v1762, %v153
    %v1768 = vmul.f32 %v1761, %v154
    %1769 = vrot.lane.b32.xlu0 %v1733, 15
    %v1770 = vpop.permute.xlu0 %1769
    %1771 = vrot.lane.b32.xlu0 %v1734, 15
    %v1772 = vpop.permute.xlu0 %1771
    %1773 = vrot.lane.b32.xlu0 %v1735, 15
    %v1774 = vpop.permute.xlu0 %1773
    %1775 = vrot.lane.b32.xlu0 %v1736, 15
    %v1776 = vpop.permute.xlu0 %1775
    %v1777 = vsel %vm186, %v1774, %v1776
    %v1778 = vsel %vm186, %v1772, %v1774
    %v1779 = vsel %vm186, %v1770, %v1772
    %v1780 = vsel %vm186, %v1776, %v1770
    %v1781 = vmul.f32 %v1780, %v192
    %v1782 = vmul.f32 %v1779, %v193
    %v1783 = vmul.f32 %v1778, %v194
    %v1784 = vmul.f32 %v1777, %v195
    %1785 = vrot.lane.b32.xlu0 %v1733, 1
    %v1786 = vpop.permute.xlu0 %1785
    %1787 = vrot.lane.b32.xlu0 %v1734, 1
    %v1788 = vpop.permute.xlu0 %1787
    %1789 = vrot.lane.b32.xlu0 %v1735, 1
    %v1790 = vpop.permute.xlu0 %1789
    %1791 = vrot.lane.b32.xlu0 %v1736, 1
    %v1792 = vpop.permute.xlu0 %1791
    %v1793 = vsel %vm227, %v1790, %v1792
    %v1794 = vsel %vm227, %v1788, %v1790
    %v1795 = vsel %vm227, %v1786, %v1788
    %v1796 = vsel %vm227, %v1792, %v1786
    %v1797 = vmul.f32 %v1796, %v233
    %v1798 = vmul.f32 %v1795, %v234
    %v1799 = vmul.f32 %v1794, %v235
    %v1800 = vmul.f32 %v1793, %v236
    %1801 = vrot.lane.b32.xlu0 %v1733, 127
    %v1802 = vpop.permute.xlu0 %1801
    %1803 = vrot.lane.b32.xlu0 %v1734, 127
    %v1804 = vpop.permute.xlu0 %1803
    %1805 = vrot.lane.b32.xlu0 %v1735, 127
    %v1806 = vpop.permute.xlu0 %1805
    %1807 = vrot.lane.b32.xlu0 %v1736, 127
    %v1808 = vpop.permute.xlu0 %1807
    %v1809 = vsel %vm268, %v1806, %v1808
    %v1810 = vsel %vm268, %v1804, %v1806
    %v1811 = vsel %vm268, %v1802, %v1804
    %v1812 = vsel %vm268, %v1808, %v1802
    %v1813 = vmul.f32 %v1811, %v274
    %v1814 = vmul.f32 %v1810, %v275
    %v1815 = vmul.f32 %v1809, %v276
    %v1816 = vmul.f32 %v1812, %v277
    %1817 = vrot.lane.b32.xlu0 %v1733, 113
    %v1818 = vpop.permute.xlu0 %1817
    %1819 = vrot.lane.b32.xlu0 %v1734, 113
    %v1820 = vpop.permute.xlu0 %1819
    %1821 = vrot.lane.b32.xlu0 %v1735, 113
    %v1822 = vpop.permute.xlu0 %1821
    %1823 = vrot.lane.b32.xlu0 %v1736, 113
    %v1824 = vpop.permute.xlu0 %1823
    %v1825 = vsel %vm309, %v1822, %v1824
    %v1826 = vsel %vm309, %v1820, %v1822
    %v1827 = vsel %vm309, %v1818, %v1820
    %v1828 = vsel %vm309, %v1824, %v1818
    %v1829 = vmul.f32 %v1827, %v315
    %v1830 = vmul.f32 %v1826, %v316
    %v1831 = vmul.f32 %v1825, %v317
    %v1832 = vmul.f32 %v1828, %v318
    %1833 = vrot.lane.b32.xlu0 %v1733, 112
    %v1834 = vpop.permute.xlu0 %1833
    %1835 = vrot.lane.b32.xlu0 %v1734, 112
    %v1836 = vpop.permute.xlu0 %1835
    %1837 = vrot.lane.b32.xlu0 %v1735, 112
    %v1838 = vpop.permute.xlu0 %1837
    %1839 = vrot.lane.b32.xlu0 %v1736, 112
    %v1840 = vpop.permute.xlu0 %1839
    %v1841 = vsel %vm350, %v1838, %v1840
    %v1842 = vsel %vm350, %v1836, %v1838
    %v1843 = vsel %vm350, %v1834, %v1836
    %v1844 = vsel %vm350, %v1840, %v1834
    %v1845 = vmul.f32 %v1843, %v356
    %v1846 = vmul.f32 %v1842, %v357
    %v1847 = vmul.f32 %v1841, %v358
    %v1848 = vmul.f32 %v1844, %v359
    %1849 = vrot.lane.b32.xlu0 %v1733, 111
    %v1850 = vpop.permute.xlu0 %1849
    %1851 = vrot.lane.b32.xlu0 %v1734, 111
    %v1852 = vpop.permute.xlu0 %1851
    %1853 = vrot.lane.b32.xlu0 %v1735, 111
    %v1854 = vpop.permute.xlu0 %1853
    %1855 = vrot.lane.b32.xlu0 %v1736, 111
    %v1856 = vpop.permute.xlu0 %1855
    %v1857 = vsel %vm391, %v1854, %v1856
    %v1858 = vsel %vm391, %v1852, %v1854
    %v1859 = vsel %vm391, %v1850, %v1852
    %v1860 = vsel %vm391, %v1856, %v1850
    %v1861 = vmul.f32 %v1859, %v397
    %v1862 = vmul.f32 %v1858, %v398
    %v1863 = vmul.f32 %v1857, %v399
    %v1864 = vmul.f32 %v1860, %v400
    %v1869 = vrot.slane %v1765, 6
    %v1870 = vrot.slane %v1766, 6
    %v1871 = vrot.slane %v1767, 6
    %v1872 = vrot.slane %v1768, 6
    %v1881 = vrot.slane %v1781, 4
    %v1882 = vrot.slane %v1782, 4
    %v1883 = vrot.slane %v1783, 4
    %v1884 = vrot.slane %v1784, 4
    %v1893 = vrot.slane %v1797, 2
    %v1894 = vrot.slane %v1798, 2
    %v1895 = vrot.slane %v1799, 2
    %v1896 = vrot.slane %v1800, 2
    %v1905 = vrot.slane %v1813, 6
    %v1906 = vrot.slane %v1814, 6
    %v1907 = vrot.slane %v1815, 6
    %v1908 = vrot.slane %v1816, 6
    %v1917 = vrot.slane %v1829, 4
    %v1918 = vrot.slane %v1830, 4
    %v1919 = vrot.slane %v1831, 4
    %v1920 = vrot.slane %v1832, 4
    %v1929 = vrot.slane %v1845, 2
    %v1930 = vrot.slane %v1846, 2
    %v1931 = vrot.slane %v1847, 2
    %v1932 = vrot.slane %v1848, 2
    %v1937 = vsel %vm496, %v1749, %v1869
    %v1938 = vsel %vm496, %v1750, %v1870
    %v1939 = vsel %vm496, %v1751, %v1871
    %v1940 = vsel %vm496, %v1752, %v1872
    %v1941 = vsel %vm501, %v1937, %v1881
    %v1942 = vsel %vm501, %v1938, %v1882
    %v1943 = vsel %vm501, %v1939, %v1883
    %v1944 = vsel %vm501, %v1940, %v1884
    %v1945 = vsel %vm506, %v1941, %v1893
    %v1946 = vsel %vm506, %v1942, %v1894
    %v1947 = vsel %vm506, %v1943, %v1895
    %v1948 = vsel %vm506, %v1944, %v1896
    %v1949 = vsel %vm496, %v1733, %v1905
    %v1950 = vsel %vm496, %v1734, %v1906
    %v1951 = vsel %vm496, %v1735, %v1907
    %v1952 = vsel %vm496, %v1736, %v1908
    %v1953 = vsel %vm501, %v1949, %v1917
    %v1954 = vsel %vm501, %v1950, %v1918
    %v1955 = vsel %vm501, %v1951, %v1919
    %v1956 = vsel %vm501, %v1952, %v1920
    %v1957 = vsel %vm506, %v1953, %v1929
    %v1958 = vsel %vm506, %v1954, %v1930
    %v1959 = vsel %vm506, %v1955, %v1931
    %v1960 = vsel %vm506, %v1956, %v1932
    %v1961 = vsel %vm496, %v1861, 1.0
    %v1962 = vsel %vm496, %v1862, 1.0
    %v1963 = vsel %vm496, %v1863, 1.0
    %v1964 = vsel %vm496, %v1864, 1.0
    %s1965 = scalar_lea.vmem [#allocation7], 8
    %v1966 = vld [vmem:[%s1965] sm:$0x3]
    %v1968 = vsel %vm528, %v1966, 0
    %v1971 = vsel %vm532, %v1961, 0
    %v1974 = vsel %vm532, %v1962, 0
    %v1977 = vsel %vm532, %v1963, 0
    %v1980 = vsel %vm532, %v1964, 0
    %1982 = vmatpush.msra.mxu0 0.0
    %1983 = vmatpush.msra.mxu0 0.0
    %1984 = vmatpush.msra.mxu0 0.0
    %1985 = vmatpush.msra.mxu0 0.0
    %1986 = vmatpush.msra.mxu0 0.0
    %1987 = vmatpush.msra.mxu0 0.0
    %1988 = vmatpush.msra.mxu0 0.0
    %1989 = vmatpush.msra.mxu0 0.0
    %1990 = vmatpush.msra.mxu0 0.0
    %1991 = vmatpush.msra.mxu0 0.0
    %1992 = vmatpush.msra.mxu0 0.0
    %1993 = vmatpush.msra.mxu0 0.0
    %1994 = vmatpush.msra.mxu0 0.0
    %1995 = vmatpush.msra.mxu0 %v1971
    %1996 = vmatpush.msra.mxu0 %v1957
    %1997 = vmatpush.msra.mxu0 %v1945
    %1998 = vmatmul.f32.gmra.mxu0 %v1968
    %v1999 = vpop.f32.mrf.mxu0
    %v2000 = vadd.f32 0.0, %v1999
    %2001 = vdwg.mxu0
    %2002 = vmatpush.msra.mxu0 0.0
    %2003 = vmatpush.msra.mxu0 0.0
    %2004 = vmatpush.msra.mxu0 0.0
    %2005 = vmatpush.msra.mxu0 0.0
    %2006 = vmatpush.msra.mxu0 0.0
    %2007 = vmatpush.msra.mxu0 0.0
    %2008 = vmatpush.msra.mxu0 0.0
    %2009 = vmatpush.msra.mxu0 0.0
    %2010 = vmatpush.msra.mxu0 0.0
    %2011 = vmatpush.msra.mxu0 0.0
    %2012 = vmatpush.msra.mxu0 0.0
    %2013 = vmatpush.msra.mxu0 0.0
    %2014 = vmatpush.msra.mxu0 0.0
    %2015 = vmatpush.msra.mxu0 %v1974
    %2016 = vmatpush.msra.mxu0 %v1958
    %2017 = vmatpush.msra.mxu0 %v1946
    %2018 = vmatmul.f32.gmra.mxu0 %v1968
    %v2019 = vpop.f32.mrf.mxu0
    %v2020 = vadd.f32 0.0, %v2019
    %2021 = vdwg.mxu0
    %2022 = vmatpush.msra.mxu0 0.0
    %2023 = vmatpush.msra.mxu0 0.0
    %2024 = vmatpush.msra.mxu0 0.0
    %2025 = vmatpush.msra.mxu0 0.0
    %2026 = vmatpush.msra.mxu0 0.0
    %2027 = vmatpush.msra.mxu0 0.0
    %2028 = vmatpush.msra.mxu0 0.0
    %2029 = vmatpush.msra.mxu0 0.0
    %2030 = vmatpush.msra.mxu0 0.0
    %2031 = vmatpush.msra.mxu0 0.0
    %2032 = vmatpush.msra.mxu0 0.0
    %2033 = vmatpush.msra.mxu0 0.0
    %2034 = vmatpush.msra.mxu0 0.0
    %2035 = vmatpush.msra.mxu0 %v1977
    %2036 = vmatpush.msra.mxu0 %v1959
    %2037 = vmatpush.msra.mxu0 %v1947
    %2038 = vmatmul.f32.gmra.mxu0 %v1968
    %v2039 = vpop.f32.mrf.mxu0
    %v2040 = vadd.f32 0.0, %v2039
    %2041 = vdwg.mxu0
    %2042 = vmatpush.msra.mxu0 0.0
    %2043 = vmatpush.msra.mxu0 0.0
    %2044 = vmatpush.msra.mxu0 0.0
    %2045 = vmatpush.msra.mxu0 0.0
    %2046 = vmatpush.msra.mxu0 0.0
    %2047 = vmatpush.msra.mxu0 0.0
    %2048 = vmatpush.msra.mxu0 0.0
    %2049 = vmatpush.msra.mxu0 0.0
    %2050 = vmatpush.msra.mxu0 0.0
    %2051 = vmatpush.msra.mxu0 0.0
    %2052 = vmatpush.msra.mxu0 0.0
    %2053 = vmatpush.msra.mxu0 0.0
    %2054 = vmatpush.msra.mxu0 0.0
    %2055 = vmatpush.msra.mxu0 %v1980
    %2056 = vmatpush.msra.mxu0 %v1960
    %2057 = vmatpush.msra.mxu0 %v1948
    %2058 = vmatmul.f32.gmra.mxu0 %v1968
    %v2059 = vpop.f32.mrf.mxu0
    %v2060 = vadd.f32 0.0, %v2059
    %2061 = vdwg.mxu0
    %v2062 = vmul.f32 %v2000, 0.1
    %v2063 = vmul.f32 %v2020, 0.1
    %v2064 = vmul.f32 %v2040, 0.1
    %v2065 = vmul.f32 %v2060, 0.1
    %v2066 = vmax.f32 %v2000, %v2062
    %v2067 = vmax.f32 %v2020, %v2063
    %v2068 = vmax.f32 %v2040, %v2064
    %v2069 = vmax.f32 %v2060, %v2065
    %2070 = vrot.lane.b32.xlu0 %v2066, 17
    %v2071 = vpop.permute.xlu0 %2070
    %2072 = vrot.lane.b32.xlu0 %v2067, 17
    %v2073 = vpop.permute.xlu0 %2072
    %2074 = vrot.lane.b32.xlu0 %v2068, 17
    %v2075 = vpop.permute.xlu0 %2074
    %2076 = vrot.lane.b32.xlu0 %v2069, 17
    %v2077 = vpop.permute.xlu0 %2076
    %v2078 = vsel %vm104, %v2075, %v2077
    %v2079 = vsel %vm104, %v2073, %v2075
    %v2080 = vsel %vm104, %v2071, %v2073
    %v2081 = vsel %vm104, %v2077, %v2071
    %v2082 = vmul.f32 %v2081, %v110
    %v2083 = vmul.f32 %v2080, %v111
    %v2084 = vmul.f32 %v2079, %v112
    %v2085 = vmul.f32 %v2078, %v113
    %2086 = vrot.lane.b32.xlu0 %v2066, 16
    %v2087 = vpop.permute.xlu0 %2086
    %2088 = vrot.lane.b32.xlu0 %v2067, 16
    %v2089 = vpop.permute.xlu0 %2088
    %2090 = vrot.lane.b32.xlu0 %v2068, 16
    %v2091 = vpop.permute.xlu0 %2090
    %2092 = vrot.lane.b32.xlu0 %v2069, 16
    %v2093 = vpop.permute.xlu0 %2092
    %v2094 = vsel %vm145, %v2091, %v2093
    %v2095 = vsel %vm145, %v2089, %v2091
    %v2096 = vsel %vm145, %v2087, %v2089
    %v2097 = vsel %vm145, %v2093, %v2087
    %v2098 = vmul.f32 %v2097, %v151
    %v2099 = vmul.f32 %v2096, %v152
    %v2100 = vmul.f32 %v2095, %v153
    %v2101 = vmul.f32 %v2094, %v154
    %2102 = vrot.lane.b32.xlu0 %v2066, 15
    %v2103 = vpop.permute.xlu0 %2102
    %2104 = vrot.lane.b32.xlu0 %v2067, 15
    %v2105 = vpop.permute.xlu0 %2104
    %2106 = vrot.lane.b32.xlu0 %v2068, 15
    %v2107 = vpop.permute.xlu0 %2106
    %2108 = vrot.lane.b32.xlu0 %v2069, 15
    %v2109 = vpop.permute.xlu0 %2108
    %v2110 = vsel %vm186, %v2107, %v2109
    %v2111 = vsel %vm186, %v2105, %v2107
    %v2112 = vsel %vm186, %v2103, %v2105
    %v2113 = vsel %vm186, %v2109, %v2103
    %v2114 = vmul.f32 %v2113, %v192
    %v2115 = vmul.f32 %v2112, %v193
    %v2116 = vmul.f32 %v2111, %v194
    %v2117 = vmul.f32 %v2110, %v195
    %2118 = vrot.lane.b32.xlu0 %v2066, 1
    %v2119 = vpop.permute.xlu0 %2118
    %2120 = vrot.lane.b32.xlu0 %v2067, 1
    %v2121 = vpop.permute.xlu0 %2120
    %2122 = vrot.lane.b32.xlu0 %v2068, 1
    %v2123 = vpop.permute.xlu0 %2122
    %2124 = vrot.lane.b32.xlu0 %v2069, 1
    %v2125 = vpop.permute.xlu0 %2124
    %v2126 = vsel %vm227, %v2123, %v2125
    %v2127 = vsel %vm227, %v2121, %v2123
    %v2128 = vsel %vm227, %v2119, %v2121
    %v2129 = vsel %vm227, %v2125, %v2119
    %v2130 = vmul.f32 %v2129, %v233
    %v2131 = vmul.f32 %v2128, %v234
    %v2132 = vmul.f32 %v2127, %v235
    %v2133 = vmul.f32 %v2126, %v236
    %2134 = vrot.lane.b32.xlu0 %v2066, 127
    %v2135 = vpop.permute.xlu0 %2134
    %2136 = vrot.lane.b32.xlu0 %v2067, 127
    %v2137 = vpop.permute.xlu0 %2136
    %2138 = vrot.lane.b32.xlu0 %v2068, 127
    %v2139 = vpop.permute.xlu0 %2138
    %2140 = vrot.lane.b32.xlu0 %v2069, 127
    %v2141 = vpop.permute.xlu0 %2140
    %v2142 = vsel %vm268, %v2139, %v2141
    %v2143 = vsel %vm268, %v2137, %v2139
    %v2144 = vsel %vm268, %v2135, %v2137
    %v2145 = vsel %vm268, %v2141, %v2135
    %v2146 = vmul.f32 %v2144, %v274
    %v2147 = vmul.f32 %v2143, %v275
    %v2148 = vmul.f32 %v2142, %v276
    %v2149 = vmul.f32 %v2145, %v277
    %2150 = vrot.lane.b32.xlu0 %v2066, 113
    %v2151 = vpop.permute.xlu0 %2150
    %2152 = vrot.lane.b32.xlu0 %v2067, 113
    %v2153 = vpop.permute.xlu0 %2152
    %2154 = vrot.lane.b32.xlu0 %v2068, 113
    %v2155 = vpop.permute.xlu0 %2154
    %2156 = vrot.lane.b32.xlu0 %v2069, 113
    %v2157 = vpop.permute.xlu0 %2156
    %v2158 = vsel %vm309, %v2155, %v2157
    %v2159 = vsel %vm309, %v2153, %v2155
    %v2160 = vsel %vm309, %v2151, %v2153
    %v2161 = vsel %vm309, %v2157, %v2151
    %v2162 = vmul.f32 %v2160, %v315
    %v2163 = vmul.f32 %v2159, %v316
    %v2164 = vmul.f32 %v2158, %v317
    %v2165 = vmul.f32 %v2161, %v318
    %2166 = vrot.lane.b32.xlu0 %v2066, 112
    %v2167 = vpop.permute.xlu0 %2166
    %2168 = vrot.lane.b32.xlu0 %v2067, 112
    %v2169 = vpop.permute.xlu0 %2168
    %2170 = vrot.lane.b32.xlu0 %v2068, 112
    %v2171 = vpop.permute.xlu0 %2170
    %2172 = vrot.lane.b32.xlu0 %v2069, 112
    %v2173 = vpop.permute.xlu0 %2172
    %v2174 = vsel %vm350, %v2171, %v2173
    %v2175 = vsel %vm350, %v2169, %v2171
    %v2176 = vsel %vm350, %v2167, %v2169
    %v2177 = vsel %vm350, %v2173, %v2167
    %v2178 = vmul.f32 %v2176, %v356
    %v2179 = vmul.f32 %v2175, %v357
    %v2180 = vmul.f32 %v2174, %v358
    %v2181 = vmul.f32 %v2177, %v359
    %2182 = vrot.lane.b32.xlu0 %v2066, 111
    %v2183 = vpop.permute.xlu0 %2182
    %2184 = vrot.lane.b32.xlu0 %v2067, 111
    %v2185 = vpop.permute.xlu0 %2184
    %2186 = vrot.lane.b32.xlu0 %v2068, 111
    %v2187 = vpop.permute.xlu0 %2186
    %2188 = vrot.lane.b32.xlu0 %v2069, 111
    %v2189 = vpop.permute.xlu0 %2188
    %v2190 = vsel %vm391, %v2187, %v2189
    %v2191 = vsel %vm391, %v2185, %v2187
    %v2192 = vsel %vm391, %v2183, %v2185
    %v2193 = vsel %vm391, %v2189, %v2183
    %v2194 = vmul.f32 %v2192, %v397
    %v2195 = vmul.f32 %v2191, %v398
    %v2196 = vmul.f32 %v2190, %v399
    %v2197 = vmul.f32 %v2193, %v400
    %v2202 = vrot.slane %v2098, 6
    %v2203 = vrot.slane %v2099, 6
    %v2204 = vrot.slane %v2100, 6
    %v2205 = vrot.slane %v2101, 6
    %v2214 = vrot.slane %v2114, 4
    %v2215 = vrot.slane %v2115, 4
    %v2216 = vrot.slane %v2116, 4
    %v2217 = vrot.slane %v2117, 4
    %v2226 = vrot.slane %v2130, 2
    %v2227 = vrot.slane %v2131, 2
    %v2228 = vrot.slane %v2132, 2
    %v2229 = vrot.slane %v2133, 2
    %v2238 = vrot.slane %v2146, 6
    %v2239 = vrot.slane %v2147, 6
    %v2240 = vrot.slane %v2148, 6
    %v2241 = vrot.slane %v2149, 6
    %v2250 = vrot.slane %v2162, 4
    %v2251 = vrot.slane %v2163, 4
    %v2252 = vrot.slane %v2164, 4
    %v2253 = vrot.slane %v2165, 4
    %v2262 = vrot.slane %v2178, 2
    %v2263 = vrot.slane %v2179, 2
    %v2264 = vrot.slane %v2180, 2
    %v2265 = vrot.slane %v2181, 2
    %v2270 = vsel %vm496, %v2082, %v2202
    %v2271 = vsel %vm496, %v2083, %v2203
    %v2272 = vsel %vm496, %v2084, %v2204
    %v2273 = vsel %vm496, %v2085, %v2205
    %v2274 = vsel %vm501, %v2270, %v2214
    %v2275 = vsel %vm501, %v2271, %v2215
    %v2276 = vsel %vm501, %v2272, %v2216
    %v2277 = vsel %vm501, %v2273, %v2217
    %v2278 = vsel %vm506, %v2274, %v2226
    %v2279 = vsel %vm506, %v2275, %v2227
    %v2280 = vsel %vm506, %v2276, %v2228
    %v2281 = vsel %vm506, %v2277, %v2229
    %v2282 = vsel %vm496, %v2066, %v2238
    %v2283 = vsel %vm496, %v2067, %v2239
    %v2284 = vsel %vm496, %v2068, %v2240
    %v2285 = vsel %vm496, %v2069, %v2241
    %v2286 = vsel %vm501, %v2282, %v2250
    %v2287 = vsel %vm501, %v2283, %v2251
    %v2288 = vsel %vm501, %v2284, %v2252
    %v2289 = vsel %vm501, %v2285, %v2253
    %v2290 = vsel %vm506, %v2286, %v2262
    %v2291 = vsel %vm506, %v2287, %v2263
    %v2292 = vsel %vm506, %v2288, %v2264
    %v2293 = vsel %vm506, %v2289, %v2265
    %v2294 = vsel %vm496, %v2194, 1.0
    %v2295 = vsel %vm496, %v2195, 1.0
    %v2296 = vsel %vm496, %v2196, 1.0
    %v2297 = vsel %vm496, %v2197, 1.0
    %s2298 = scalar_lea.vmem [#allocation7], 10
    %v2299 = vld [vmem:[%s2298] sm:$0x3]
    %v2301 = vsel %vm528, %v2299, 0
    %v2304 = vsel %vm532, %v2294, 0
    %v2307 = vsel %vm532, %v2295, 0
    %v2310 = vsel %vm532, %v2296, 0
    %v2313 = vsel %vm532, %v2297, 0
    %2315 = vmatpush.msra.mxu0 0.0
    %2316 = vmatpush.msra.mxu0 0.0
    %2317 = vmatpush.msra.mxu0 0.0
    %2318 = vmatpush.msra.mxu0 0.0
    %2319 = vmatpush.msra.mxu0 0.0
    %2320 = vmatpush.msra.mxu0 0.0
    %2321 = vmatpush.msra.mxu0 0.0
    %2322 = vmatpush.msra.mxu0 0.0
    %2323 = vmatpush.msra.mxu0 0.0
    %2324 = vmatpush.msra.mxu0 0.0
    %2325 = vmatpush.msra.mxu0 0.0
    %2326 = vmatpush.msra.mxu0 0.0
    %2327 = vmatpush.msra.mxu0 0.0
    %2328 = vmatpush.msra.mxu0 %v2304
    %2329 = vmatpush.msra.mxu0 %v2290
    %2330 = vmatpush.msra.mxu0 %v2278
    %2331 = vmatmul.f32.gmra.mxu0 %v2301
    %v2332 = vpop.f32.mrf.mxu0
    %v2333 = vadd.f32 0.0, %v2332
    %2334 = vdwg.mxu0
    %2335 = vmatpush.msra.mxu0 0.0
    %2336 = vmatpush.msra.mxu0 0.0
    %2337 = vmatpush.msra.mxu0 0.0
    %2338 = vmatpush.msra.mxu0 0.0
    %2339 = vmatpush.msra.mxu0 0.0
    %2340 = vmatpush.msra.mxu0 0.0
    %2341 = vmatpush.msra.mxu0 0.0
    %2342 = vmatpush.msra.mxu0 0.0
    %2343 = vmatpush.msra.mxu0 0.0
    %2344 = vmatpush.msra.mxu0 0.0
    %2345 = vmatpush.msra.mxu0 0.0
    %2346 = vmatpush.msra.mxu0 0.0
    %2347 = vmatpush.msra.mxu0 0.0
    %2348 = vmatpush.msra.mxu0 %v2307
    %2349 = vmatpush.msra.mxu0 %v2291
    %2350 = vmatpush.msra.mxu0 %v2279
    %2351 = vmatmul.f32.gmra.mxu0 %v2301
    %v2352 = vpop.f32.mrf.mxu0
    %v2353 = vadd.f32 0.0, %v2352
    %2354 = vdwg.mxu0
    %2355 = vmatpush.msra.mxu0 0.0
    %2356 = vmatpush.msra.mxu0 0.0
    %2357 = vmatpush.msra.mxu0 0.0
    %2358 = vmatpush.msra.mxu0 0.0
    %2359 = vmatpush.msra.mxu0 0.0
    %2360 = vmatpush.msra.mxu0 0.0
    %2361 = vmatpush.msra.mxu0 0.0
    %2362 = vmatpush.msra.mxu0 0.0
    %2363 = vmatpush.msra.mxu0 0.0
    %2364 = vmatpush.msra.mxu0 0.0
    %2365 = vmatpush.msra.mxu0 0.0
    %2366 = vmatpush.msra.mxu0 0.0
    %2367 = vmatpush.msra.mxu0 0.0
    %2368 = vmatpush.msra.mxu0 %v2310
    %2369 = vmatpush.msra.mxu0 %v2292
    %2370 = vmatpush.msra.mxu0 %v2280
    %2371 = vmatmul.f32.gmra.mxu0 %v2301
    %v2372 = vpop.f32.mrf.mxu0
    %v2373 = vadd.f32 0.0, %v2372
    %2374 = vdwg.mxu0
    %2375 = vmatpush.msra.mxu0 0.0
    %2376 = vmatpush.msra.mxu0 0.0
    %2377 = vmatpush.msra.mxu0 0.0
    %2378 = vmatpush.msra.mxu0 0.0
    %2379 = vmatpush.msra.mxu0 0.0
    %2380 = vmatpush.msra.mxu0 0.0
    %2381 = vmatpush.msra.mxu0 0.0
    %2382 = vmatpush.msra.mxu0 0.0
    %2383 = vmatpush.msra.mxu0 0.0
    %2384 = vmatpush.msra.mxu0 0.0
    %2385 = vmatpush.msra.mxu0 0.0
    %2386 = vmatpush.msra.mxu0 0.0
    %2387 = vmatpush.msra.mxu0 0.0
    %2388 = vmatpush.msra.mxu0 %v2313
    %2389 = vmatpush.msra.mxu0 %v2293
    %2390 = vmatpush.msra.mxu0 %v2281
    %2391 = vmatmul.f32.gmra.mxu0 %v2301
    %v2392 = vpop.f32.mrf.mxu0
    %v2393 = vadd.f32 0.0, %v2392
    %2394 = vdwg.mxu0
    %v2399 = vrot.slane %v2353, 4
    %v2400 = vrot.slane %v2393, 4
    %v2401 = vsel %vm501, %v2333, %v2399
    %v2402 = vsel %vm501, %v2373, %v2400
    %v2403 = vrot.slane %v2401, 6
    %v2404 = vrot.slane %v2402, 6
    %v2407 = vadd.f32 %v60, %v2403
    %v2408 = vadd.f32 %v61, %v2404
    %2409 = vst [vmem:[#allocation1] ss:$2 sm:$0xff] %v1301
    %s2410 = scalar_lea.vmem [#allocation1], 16
    %2411 = vst [vmem:[%s2410] ss:$2 sm:$0xff] %v1302
    %v2412 = vld.sshfl [vmem:[#allocation1] sm:$0xff pattern:$0x75316420]
    %v2413 = vld.sshfl [vmem:[#allocation1 + $0x8] sm:$0xff pattern:$0x75316420]
    %v2414 = vld.sshfl [vmem:[#allocation1 + $0x10] sm:$0xff pattern:$0x75316420]
    %v2415 = vld.sshfl [vmem:[#allocation1 + $0x18] sm:$0xff pattern:$0x75316420]
    %2422 = vst [vmem:[#allocation1] ss:$2 sm:$0xff] %v2407
    %s2423 = scalar_lea.vmem [#allocation1], 16
    %2424 = vst [vmem:[%s2423] ss:$2 sm:$0xff] %v2408
    %v2425 = vld.sshfl [vmem:[#allocation1] sm:$0xff pattern:$0x75316420]
    %v2426 = vld.sshfl [vmem:[#allocation1 + $0x8] sm:$0xff pattern:$0x75316420]
    %v2427 = vld.sshfl [vmem:[#allocation1 + $0x10] sm:$0xff pattern:$0x75316420]
    %v2428 = vld.sshfl [vmem:[#allocation1 + $0x18] sm:$0xff pattern:$0x75316420]
    %v2433 = vsel %vm496, %v2412, %v2425
    %v2434 = vsel %vm496, %v2413, %v2426
    %v2435 = vsel %vm496, %v2414, %v2427
    %v2436 = vsel %vm496, %v2415, %v2428
    %v2441 = vrot.slane %v2434, 4
    %v2442 = vrot.slane %v2436, 4
    %v2443 = vsel %vm501, %v2433, %v2441
    %v2444 = vsel %vm501, %v2435, %v2442
    %2447 = vst [vmem:[#allocation8] sm:$0xff] %v2443
    %2448 = vst [vmem:[#allocation8 + $0x8] sm:$0xff] %v2444
    // Predicated region
    $region26: #{tpu_custom_call.1} parent=1 // pred_check
      _
    $region27: #{tpu_custom_call.1} parent=1 // pred_check_branch
      %2450 = sbr.rel (0) target = $region29
    $region28: #{tpu_custom_call.1} parent=1 // pred_region
      %2452 = vsyncadd [#allocation4], 0
      %s2454 = sshll.u32 [#allocation8], 4
      %s2455 = int_to_ptr.vmem [resolvable:$true] %s2454
      %s2456 = sshll.u32 %s3, 4
      %s2457 = int_to_ptr.hbm [resolvable:$true] %s2456
      %2459 = dma.vmem_to_hbm [thread:$0]  %s2455, 256, %s2457, [#allocation4]
    $region29: #{tpu_custom_call.1} parent=1 // pred_fallthru
      _
    // Predicated region
    $region30: #{tpu_custom_call.1} parent=1 // pred_check
      _
    $region31: #{tpu_custom_call.1} parent=1 // pred_check_branch
      %2461 = sbr.rel (0) target = $region33
    $region32: #{tpu_custom_call.1} parent=1 // pred_region
      %2463 = dma.done [#allocation4], 256
    $region33: #{tpu_custom_call.1} parent=1 // pred_fallthru
      _
    %2464 = vsyncpa [#allocation3], 1
    %2465 = vsyncpa [#allocation6], 1
    %2466 = vsyncpa [#allocation4], 1

</llo_original>
